<compile_context>
chip_gen: v7x
topology: tpu7x:2x2x1
jax: 0.10.0
libtpu: 0.0.40
codegen_flags: <defaults>
</compile_context>

<pallas_src>
import numpy as np
import jax
import jax.numpy as jnp
from jax.experimental import pallas as pl
from jax.experimental.pallas import tpu as pltpu

# Model dims (from the PyTorch module):
#   conv1: Conv1d(7, 30, k=5)   L: 15 -> 11
#   conv2: Conv1d(30, 10, k=5)  L: 11 -> 7
#   conv3: Conv1d(10, 5, k=3)   L: 7  -> 5   -> flatten 5*5 = 25
#   linear: 25 -> 5, label: 5 -> 2, softmax over dim=1
C_IN, L_IN = 7, 15
C1, K1, L1 = 30, 5, 11
C2, K2, L2 = 10, 5, 7
C3, K3, L3 = 5, 3, 5
HID, OUT = 5, 2


def _round_up(x, m):
    return ((x + m - 1) // m) * m


# ---------------------------------------------------------------------------
# Kernel: five GEMMs (M = TB) + f32 epilogue + softmax.
# ---------------------------------------------------------------------------
def m6anet_kernel(x_ref, w1_ref, w2_ref, w3_ref, w4_ref, w5_ref, bias_ref, out_ref):
    # x_ref:   (TB, 105)  f32   -- torch NCL flatten (column = c*L_IN + l)
    # wN_ref:  dense per-layer weights (f32 or bf16)
    # bias_ref:(5, 330)   f32   -- row i = (zero-padded) bias of layer i
    # out_ref: (TB, 2)    f32
    cd = w1_ref.dtype          # matmul compute dtype (f32 or bf16)
    h = x_ref[...]             # f32

    def dense(h_in, w_ref, bias_row, n_out, relu=True):
        # One MXU GEMM with M = TB; accumulate in f32.
        z = jnp.dot(h_in.astype(cd), w_ref[...],
                    preferred_element_type=jnp.float32)
        z = z + bias_ref[bias_row:bias_row + 1, 0:n_out]   # f32 VPU bias add
        return jnp.maximum(z, 0.0) if relu else z

    h = dense(h, w1_ref, 0, C1 * L1)            # conv1 + ReLU -> (TB, 330)
    h = dense(h, w2_ref, 1, C2 * L2)            # conv2 + ReLU -> (TB, 70)
    h = dense(h, w3_ref, 2, C3 * L3)            # conv3 + ReLU -> (TB, 25), torch flatten order
    h = dense(h, w4_ref, 3, HID)                # linear + ReLU -> (TB, 5)
    logits = dense(h, w5_ref, 4, OUT, relu=False)   # label -> (TB, 2)

    # softmax over dim=1 (f32, EUP exp + EUP approximate reciprocal)
    m = jnp.max(logits, axis=-1, keepdims=True)
    e = jnp.exp(logits - m)
    inv = pl.reciprocal(jnp.sum(e, axis=-1, keepdims=True), approx=True)
    out_ref[...] = e * inv


# ---------------------------------------------------------------------------
# Host-side parameter folding (runs once).
# ---------------------------------------------------------------------------
def _conv1d_as_dense(w, l_in, l_out):
    """Fold a torch Conv1d weight (C_out, C_in, K) into D: (C_in*l_in, C_out*l_out)
    so that, with x flattened channel-major (column c*l_in + l), x_flat @ D equals
    the VALID conv output flattened channel-major (column o*l_out + l)."""
    c_out, c_in, k = w.shape
    w = np.asarray(w, np.float32)
    d = np.zeros((c_in * l_in, c_out * l_out), np.float32)
    for o in range(c_out):
        for c in range(c_in):
            for t in range(k):
                for l in range(l_out):
                    d[c * l_in + l + t, o * l_out + l] = w[o, c, t]
    return d


def pack_params(p, compute_dtype=jnp.float32):
    """Build the five dense weight matrices and the packed bias block."""
    w1 = _conv1d_as_dense(p["w1"], L_IN, L1)                 # (105, 330)
    w2 = _conv1d_as_dense(p["w2"], L1, L2)                   # (330, 70)
    w3 = _conv1d_as_dense(p["w3"], L2, L3)                   # (70, 25)  torch-flatten cols
    w4 = np.asarray(p["wl"], np.float32).T                   # (25, 5)
    w5 = np.asarray(p["wo"], np.float32).T                   # (5, 2)

    biases = np.zeros((5, C1 * L1), np.float32)              # (5, 330), f32 always
    biases[0, :C1 * L1] = np.repeat(np.asarray(p["b1"], np.float32), L1)
    biases[1, :C2 * L2] = np.repeat(np.asarray(p["b2"], np.float32), L2)
    biases[2, :C3 * L3] = np.repeat(np.asarray(p["b3"], np.float32), L3)
    biases[3, :HID] = np.asarray(p["bl"], np.float32)
    biases[4, :OUT] = np.asarray(p["bo"], np.float32)

    cd = compute_dtype
    return (jnp.asarray(w1, cd), jnp.asarray(w2, cd), jnp.asarray(w3, cd),
            jnp.asarray(w4, cd), jnp.asarray(w5, cd), jnp.asarray(biases, jnp.float32))


# ---------------------------------------------------------------------------
# Forward wrapper.
# ---------------------------------------------------------------------------
def m6anet_forward(x_ncl, packed, *, block_b=512, vmem_limit_bytes=32 * 1024 * 1024):
    """x_ncl: (B, 7, 15) float32 (PyTorch NCL layout). Returns (B, 2) probs.

    block_b: samples per grid step (256..1024 recommended; multiple of 256 feeds
    the v6e 256x256 MXU cleanly and keeps VMEM use at a few MiB on v7x)."""
    w1, w2, w3, w4, w5, biases = packed
    B = x_ncl.shape[0]

    # NCL flatten (column = c*L_IN + l). No transpose -- just a reshape.
    x2d = jnp.reshape(x_ncl, (B, C_IN * L_IN))

    tb = min(block_b, _round_up(B, 8))
    b_pad = _round_up(B, tb)
    if b_pad != B:
        x2d = jnp.pad(x2d, ((0, b_pad - B), (0, 0)))
    grid = (b_pad // tb,)

    const = lambda i: (0, 0)   # weights/biases: constant block index -> DMA'd once
    out = pl.pallas_call(
        m6anet_kernel,
        out_shape=jax.ShapeDtypeStruct((b_pad, OUT), jnp.float32),
        grid_spec=pltpu.PrefetchScalarGridSpec(
            num_scalar_prefetch=0,
            grid=grid,
            in_specs=[
                pl.BlockSpec((tb, C_IN * L_IN), lambda i: (i, 0)),  # x block
                pl.BlockSpec(w1.shape, const),
                pl.BlockSpec(w2.shape, const),
                pl.BlockSpec(w3.shape, const),
                pl.BlockSpec(w4.shape, const),
                pl.BlockSpec(w5.shape, const),
                pl.BlockSpec(biases.shape, const),
            ],
            out_specs=pl.BlockSpec((tb, OUT), lambda i: (i, 0)),
        ),
        compiler_params=pltpu.CompilerParams(
            dimension_semantics=("parallel",),
            vmem_limit_bytes=vmem_limit_bytes,
        ),
    )(x2d, w1, w2, w3, w4, w5, biases)
    return out[:B]


# ---------------------------------------------------------------------------
# Pure-JAX reference mirroring the PyTorch forward, and param init.
# ---------------------------------------------------------------------------
def init_params(key):
    ks = jax.random.split(key, 10)
    s = 0.3  # large enough that the logits have real spread (meaningful test)
    return {
        "w1": jax.random.normal(ks[0], (C1, C_IN, K1), jnp.float32) * s,
        "b1": jax.random.normal(ks[1], (C1,), jnp.float32) * s,
        "w2": jax.random.normal(ks[2], (C2, C1, K2), jnp.float32) * s,
        "b2": jax.random.normal(ks[3], (C2,), jnp.float32) * s,
        "w3": jax.random.normal(ks[4], (C3, C2, K3), jnp.float32) * s,
        "b3": jax.random.normal(ks[5], (C3,), jnp.float32) * s,
        "wl": jax.random.normal(ks[6], (HID, C3 * L3), jnp.float32) * s,
        "bl": jax.random.normal(ks[7], (HID,), jnp.float32) * s,
        "wo": jax.random.normal(ks[8], (OUT, HID), jnp.float32) * s,
        "bo": jax.random.normal(ks[9], (OUT,), jnp.float32) * s,
    }


def m6anet_reference(x_ncl, p):
    dn = ("NCH", "OIH", "NCH")
    h = jax.lax.conv_general_dilated(x_ncl, p["w1"], (1,), "VALID",
                                     dimension_numbers=dn) + p["b1"][None, :, None]
    h = jnp.maximum(h, 0.0)
    h = jax.lax.conv_general_dilated(h, p["w2"], (1,), "VALID",
                                     dimension_numbers=dn) + p["b2"][None, :, None]
    h = jnp.maximum(h, 0.0)
    h = jax.lax.conv_general_dilated(h, p["w3"], (1,), "VALID",
                                     dimension_numbers=dn) + p["b3"][None, :, None]
    h = jnp.maximum(h, 0.0)                                   # (B, 5, 5)
    flat = h.reshape(h.shape[0], -1)                          # torch.flatten(X, 1)
    z = jnp.maximum(flat @ p["wl"].T + p["bl"], 0.0)
    logits = z @ p["wo"].T + p["bo"]
    return jax.nn.softmax(logits, axis=1)


if __name__ == "__main__":
    key = jax.random.PRNGKey(0)
    pkey, xkey = jax.random.split(key)
    params = init_params(pkey)

    # B = 300 with block_b = 256 exercises a multi-step grid plus batch padding.
    B = 300
    x = jax.random.normal(xkey, (B, C_IN, L_IN), jnp.float32)  # PyTorch NCL input

    y_ref = np.asarray(m6anet_reference(x, params))

    # f32 matmul path.  Tolerance covers the TPU's default (bf16-pass) matmul
    # precision and the EUP approximate reciprocal in the softmax; structural
    # errors would show up as O(0.1) probability differences.
    packed_f32 = pack_params(params, jnp.float32)
    y = jax.block_until_ready(m6anet_forward(x, packed_f32, block_b=256))
    assert y.shape == (B, OUT)
    assert np.all(np.isfinite(np.asarray(y)))
    np.testing.assert_allclose(np.asarray(y), y_ref, rtol=1e-2, atol=1e-2)

    # bf16 matmul-input path (per v6e/v7x feedback): bf16 dot inputs, f32
    # accumulation, f32 bias/ReLU/softmax epilogue.
    packed_bf16 = pack_params(params, jnp.bfloat16)
    y16 = jax.block_until_ready(m6anet_forward(x, packed_bf16, block_b=256))
    np.testing.assert_allclose(np.asarray(y16), y_ref, rtol=3e-2, atol=3e-2)

    # TODO(synk): predict()/fit_generator() (BCELoss training loop, torch.save)
    # are host-side training utilities, not part of the forward kernel.
    print("KERNEL_OK")
</pallas_src>

<mosaic_0001>
module attributes {stable_mosaic.version = 11 : i64} {
  func.func @m6anet_kernel(%arg0: i32, %arg1: memref<256x105xf32, #tpu.memory_space<vmem>>, %arg2: memref<105x330xf32, #tpu.memory_space<vmem>>, %arg3: memref<330x70xf32, #tpu.memory_space<vmem>>, %arg4: memref<70x25xf32, #tpu.memory_space<vmem>>, %arg5: memref<25x5xf32, #tpu.memory_space<vmem>>, %arg6: memref<5x2xf32, #tpu.memory_space<vmem>>, %arg7: memref<5x330xf32, #tpu.memory_space<vmem>>, %arg8: memref<256x2xf32, #tpu.memory_space<vmem>>) attributes {dimension_semantics = [#tpu.dimension_semantics<parallel>], iteration_bounds = array<i64: 2>, scalar_prefetch = 0 : i64, scratch_operands = 0 : i64, tpu.core_type = #tpu.core_type<tc>, window_params = [{transform_indices = @transform_0, window_bounds = array<i64: 256, 105>}, {pipeline_mode = #tpu.pipeline_mode<synchronous>, transform_indices = @transform_1, window_bounds = array<i64: 105, 330>}, {pipeline_mode = #tpu.pipeline_mode<synchronous>, transform_indices = @transform_2, window_bounds = array<i64: 330, 70>}, {pipeline_mode = #tpu.pipeline_mode<synchronous>, transform_indices = @transform_3, window_bounds = array<i64: 70, 25>}, {pipeline_mode = #tpu.pipeline_mode<synchronous>, transform_indices = @transform_4, window_bounds = array<i64: 25, 5>}, {pipeline_mode = #tpu.pipeline_mode<synchronous>, transform_indices = @transform_5, window_bounds = array<i64: 5, 2>}, {pipeline_mode = #tpu.pipeline_mode<synchronous>, transform_indices = @transform_6, window_bounds = array<i64: 5, 330>}, {transform_indices = @transform_7, window_bounds = array<i64: 256, 2>}]} {
    %c0 = arith.constant 0 : index
    %c0_0 = arith.constant 0 : index
    %0 = vector.load %arg1[%c0, %c0_0] : memref<256x105xf32, #tpu.memory_space<vmem>>, vector<256x105xf32>
    %c0_1 = arith.constant 0 : index
    %c0_2 = arith.constant 0 : index
    %1 = vector.load %arg2[%c0_1, %c0_2] : memref<105x330xf32, #tpu.memory_space<vmem>>, vector<105x330xf32>
    %cst = arith.constant dense<0.000000e+00> : vector<256x330xf32>
    %2 = tpu.matmul %0, %1, %cst {dimension_numbers = #tpu.dot_dimension_numbers<[1], [0], [0], [1], [0, 0, 1, 1], [], []>} : vector<256x105xf32>, vector<105x330xf32>, vector<256x330xf32> -> vector<256x330xf32>
    %c0_3 = arith.constant 0 : index
    %c0_4 = arith.constant 0 : index
    %3 = vector.load %arg7[%c0_3, %c0_4] : memref<5x330xf32, #tpu.memory_space<vmem>>, vector<1x330xf32>
    %4 = vector.broadcast %3 : vector<1x330xf32> to vector<256x330xf32>
    %5 = arith.addf %2, %4 : vector<256x330xf32>
    %cst_5 = arith.constant 0.000000e+00 : f32
    %6 = vector.broadcast %cst_5 : f32 to vector<256x330xf32>
    %7 = arith.maximumf %5, %6 : vector<256x330xf32>
    %c0_6 = arith.constant 0 : index
    %c0_7 = arith.constant 0 : index
    %8 = vector.load %arg3[%c0_6, %c0_7] : memref<330x70xf32, #tpu.memory_space<vmem>>, vector<330x70xf32>
    %cst_8 = arith.constant dense<0.000000e+00> : vector<256x70xf32>
    %9 = tpu.matmul %7, %8, %cst_8 {dimension_numbers = #tpu.dot_dimension_numbers<[1], [0], [0], [1], [0, 0, 1, 1], [], []>} : vector<256x330xf32>, vector<330x70xf32>, vector<256x70xf32> -> vector<256x70xf32>
    %c1 = arith.constant 1 : index
    %c0_9 = arith.constant 0 : index
    %10 = vector.load %arg7[%c1, %c0_9] : memref<5x330xf32, #tpu.memory_space<vmem>>, vector<1x70xf32>
    %11 = vector.broadcast %10 : vector<1x70xf32> to vector<256x70xf32>
    %12 = arith.addf %9, %11 : vector<256x70xf32>
    %cst_10 = arith.constant 0.000000e+00 : f32
    %13 = vector.broadcast %cst_10 : f32 to vector<256x70xf32>
    %14 = arith.maximumf %12, %13 : vector<256x70xf32>
    %c0_11 = arith.constant 0 : index
    %c0_12 = arith.constant 0 : index
    %15 = vector.load %arg4[%c0_11, %c0_12] : memref<70x25xf32, #tpu.memory_space<vmem>>, vector<70x25xf32>
    %cst_13 = arith.constant dense<0.000000e+00> : vector<256x25xf32>
    %16 = tpu.matmul %14, %15, %cst_13 {dimension_numbers = #tpu.dot_dimension_numbers<[1], [0], [0], [1], [0, 0, 1, 1], [], []>} : vector<256x70xf32>, vector<70x25xf32>, vector<256x25xf32> -> vector<256x25xf32>
    %c2 = arith.constant 2 : index
    %c0_14 = arith.constant 0 : index
    %17 = vector.load %arg7[%c2, %c0_14] : memref<5x330xf32, #tpu.memory_space<vmem>>, vector<1x25xf32>
    %18 = vector.broadcast %17 : vector<1x25xf32> to vector<256x25xf32>
    %19 = arith.addf %16, %18 : vector<256x25xf32>
    %cst_15 = arith.constant 0.000000e+00 : f32
    %20 = vector.broadcast %cst_15 : f32 to vector<256x25xf32>
    %21 = arith.maximumf %19, %20 : vector<256x25xf32>
    %c0_16 = arith.constant 0 : index
    %c0_17 = arith.constant 0 : index
    %22 = vector.load %arg5[%c0_16, %c0_17] : memref<25x5xf32, #tpu.memory_space<vmem>>, vector<25x5xf32>
    %cst_18 = arith.constant dense<0.000000e+00> : vector<256x5xf32>
    %23 = tpu.matmul %21, %22, %cst_18 {dimension_numbers = #tpu.dot_dimension_numbers<[1], [0], [0], [1], [0, 0, 1, 1], [], []>} : vector<256x25xf32>, vector<25x5xf32>, vector<256x5xf32> -> vector<256x5xf32>
    %c3 = arith.constant 3 : index
    %c0_19 = arith.constant 0 : index
    %24 = vector.load %arg7[%c3, %c0_19] : memref<5x330xf32, #tpu.memory_space<vmem>>, vector<1x5xf32>
    %25 = vector.broadcast %24 : vector<1x5xf32> to vector<256x5xf32>
    %26 = arith.addf %23, %25 : vector<256x5xf32>
    %cst_20 = arith.constant 0.000000e+00 : f32
    %27 = vector.broadcast %cst_20 : f32 to vector<256x5xf32>
    %28 = arith.maximumf %26, %27 : vector<256x5xf32>
    %c0_21 = arith.constant 0 : index
    %c0_22 = arith.constant 0 : index
    %29 = vector.load %arg6[%c0_21, %c0_22] : memref<5x2xf32, #tpu.memory_space<vmem>>, vector<5x2xf32>
    %cst_23 = arith.constant dense<0.000000e+00> : vector<256x2xf32>
    %30 = tpu.matmul %28, %29, %cst_23 {dimension_numbers = #tpu.dot_dimension_numbers<[1], [0], [0], [1], [0, 0, 1, 1], [], []>} : vector<256x5xf32>, vector<5x2xf32>, vector<256x2xf32> -> vector<256x2xf32>
    %c4 = arith.constant 4 : index
    %c0_24 = arith.constant 0 : index
    %31 = vector.load %arg7[%c4, %c0_24] : memref<5x330xf32, #tpu.memory_space<vmem>>, vector<1x2xf32>
    %32 = vector.broadcast %31 : vector<1x2xf32> to vector<256x2xf32>
    %33 = arith.addf %30, %32 : vector<256x2xf32>
    %cst_25 = arith.constant dense<0xFF800000> : vector<256xf32>
    %34 = vector.multi_reduction <maximumf>, %33, %cst_25 [1] : vector<256x2xf32> to vector<256xf32>
    %35 = vector.shape_cast %34 : vector<256xf32> to vector<256x1xf32>
    %36 = vector.broadcast %35 : vector<256x1xf32> to vector<256x2xf32>
    %37 = arith.subf %33, %36 : vector<256x2xf32>
    %38 = math.exp %37 : vector<256x2xf32>
    %cst_26 = arith.constant dense<0.000000e+00> : vector<256xf32>
    %39 = vector.multi_reduction <add>, %38, %cst_26 [1] : vector<256x2xf32> to vector<256xf32>
    %40 = vector.shape_cast %39 : vector<256xf32> to vector<256x1xf32>
    %41 = tpu.reciprocal %40 {approx = true} : vector<256x1xf32> -> vector<256x1xf32>
    %42 = vector.broadcast %41 : vector<256x1xf32> to vector<256x2xf32>
    %43 = arith.mulf %38, %42 : vector<256x2xf32>
    %c0_27 = arith.constant 0 : index
    %c0_28 = arith.constant 0 : index
    %44 = vector.load %arg8[%c0_27, %c0_28] : memref<256x2xf32, #tpu.memory_space<vmem>>, vector<256x2xf32>
    tpu.vector_store %arg8[%c0_27, %c0_28], %43 {strides = array<i32>} : memref<256x2xf32, #tpu.memory_space<vmem>>, vector<256x2xf32>,
    return
  }
  func.func @transform_0(%arg0: i32) -> (i32, i32) {
    %c0_i32 = arith.constant 0 : i32
    %c0_i32_0 = arith.constant 0 : i32
    return %arg0, %c0_i32 : i32, i32
  }
  func.func @transform_1(%arg0: i32) -> (i32, i32) {
    %c0_i32 = arith.constant 0 : i32
    %c0_i32_0 = arith.constant 0 : i32
    %c0_i32_1 = arith.constant 0 : i32
    return %c0_i32, %c0_i32_0 : i32, i32
  }
  func.func @transform_2(%arg0: i32) -> (i32, i32) {
    %c0_i32 = arith.constant 0 : i32
    %c0_i32_0 = arith.constant 0 : i32
    %c0_i32_1 = arith.constant 0 : i32
    return %c0_i32, %c0_i32_0 : i32, i32
  }
  func.func @transform_3(%arg0: i32) -> (i32, i32) {
    %c0_i32 = arith.constant 0 : i32
    %c0_i32_0 = arith.constant 0 : i32
    %c0_i32_1 = arith.constant 0 : i32
    return %c0_i32, %c0_i32_0 : i32, i32
  }
  func.func @transform_4(%arg0: i32) -> (i32, i32) {
    %c0_i32 = arith.constant 0 : i32
    %c0_i32_0 = arith.constant 0 : i32
    %c0_i32_1 = arith.constant 0 : i32
    return %c0_i32, %c0_i32_0 : i32, i32
  }
  func.func @transform_5(%arg0: i32) -> (i32, i32) {
    %c0_i32 = arith.constant 0 : i32
    %c0_i32_0 = arith.constant 0 : i32
    %c0_i32_1 = arith.constant 0 : i32
    return %c0_i32, %c0_i32_0 : i32, i32
  }
  func.func @transform_6(%arg0: i32) -> (i32, i32) {
    %c0_i32 = arith.constant 0 : i32
    %c0_i32_0 = arith.constant 0 : i32
    %c0_i32_1 = arith.constant 0 : i32
    return %c0_i32, %c0_i32_0 : i32, i32
  }
  func.func @transform_7(%arg0: i32) -> (i32, i32) {
    %c0_i32 = arith.constant 0 : i32
    %c0_i32_0 = arith.constant 0 : i32
    return %arg0, %c0_i32 : i32, i32
  }
}

</mosaic_0001>

<llo_original>
// kernel: tpu_custom_call.1
$region0: #{tpu_custom_call.1}
  #allocation0 [shape = 'u32[]', space=smem, size = 0x4, offset = 0x4, fixed_abs, tag = 'smem constant byte address 0x4 - core index']
  #allocation1 [shape = 'u32[144,128]{1,0:T(1,128)}', space=vmem, size = 0x12000, scoped, tag = 'internal scratch']
  %s0 = inlined_call_operand.vmem [shape: f32[512,105], index: 0, kind: input, shape index: {}]
  %s1 = inlined_call_operand.vmem [shape: f32[105,330], index: 1, kind: input, shape index: {}]
  %s2 = inlined_call_operand.vmem [shape: f32[330,70], index: 2, kind: input, shape index: {}]
  %s3 = inlined_call_operand.vmem [shape: f32[70,25], index: 3, kind: input, shape index: {}]
  %s4 = inlined_call_operand.vmem [shape: f32[25,5], index: 4, kind: input, shape index: {}]
  %s5 = inlined_call_operand.vmem [shape: f32[5,2], index: 5, kind: input, shape index: {}]
  %s6 = inlined_call_operand.vmem [shape: f32[5,330], index: 6, kind: input, shape index: {}]
  %s7 = inlined_call_operand.vmem [shape: f32[512,2], index: 7, kind: output, shape index: {}]
  %s8 = sld [smem:[#allocation0]]
  $region61: #{tpu_custom_call.1} parent=0
    _
  %s10 = ssub.s32 1, %s8
  %s11 = scalar_select 0, %s10, %s8
  loop: start=0, step=1, limit=4
  $region2: #{tpu_custom_call.1} parent=0 // loop_pre_header
    _
  $region3: #{tpu_custom_call.1} parent=0 // loop_header
    %s13 = sphi 0, %s17
    %p14 = scmp.ge.s32.totalorder %s13, 4
    %s23 = sphi 0, %s25
    %s26 = sphi 0, %s23
    %s27 = sphi 0, %s26
    %s43 = sphi 0, %s27
    %s47 = sphi 0, %s47
    %s49 = sphi 0, %s47
    %s50 = sphi 0, %s49
    %s64 = sphi 0, %s50
    %s68 = sphi 0, %s68
    %s70 = sphi 0, %s68
    %s71 = sphi 0, %s70
    %s85 = sphi 0, %s71
    %s89 = sphi 0, %s89
    %s91 = sphi 0, %s89
    %s92 = sphi 0, %s91
    %s106 = sphi 0, %s92
    %s110 = sphi 0, %s110
    %s112 = sphi 0, %s110
    %s113 = sphi 0, %s112
    %s127 = sphi 0, %s113
    %s131 = sphi 0, %s131
    %s133 = sphi 0, %s131
    %s134 = sphi 0, %s133
    %s148 = sphi 0, %s134
    %s152 = sphi 0, %s152
    %s154 = sphi 0, %s152
    %s155 = sphi 0, %s154
    %s169 = sphi 0, %s155
    %s175 = sphi 0, %s177
    %s178 = sphi 0, %s175
    %s179 = sphi 0, %s178
    %s195 = sphi 0, %s179
  $region4: #{tpu_custom_call.1} parent=0 // loop_header_branch
    %16 = sbr.rel (%p14) target = $region8
  $region5: #{tpu_custom_call.1} parent=0 // loop_body
    %s18 = ssub.s32 %s13, 1
    %s19 = ssub.s32 %s13, 2
    %s20 = sadd.s32 %s13, 1
    %s21 = ssub.s32 %s13, %s20
    %p22 = scmp.eq.s32.totalorder %s21, 0
    %s24 = sadd.s32 %s23, 1
    %s25 = scalar_select %p22, %s23, %s24
    %p28 = pneg %p22
    %p29 = scmp.eq.s32.totalorder %s13, 1
    %p30 = por %p28, %p29
    %p31 = scmp.ne.s32.totalorder %s23, %s26
    %p32 = scmp.eq.s32.totalorder %s13, 0
    %p33 = por %p31, %p32
    %p34 = scmp.ne.s32.totalorder %s23, %s26
    %p35 = scmp.eq.s32.totalorder %s18, 1
    %p36 = por %p34, %p35
    %p37 = scmp.ne.s32.totalorder %s26, %s27
    %p38 = scmp.eq.s32.totalorder %s18, 0
    %p39 = por %p37, %p38
    %p40 = scmp.ne.s32.totalorder %s26, %s27
    %p41 = scmp.eq.s32.totalorder %s19, 1
    %p42 = por %p40, %p41
    %p44 = scmp.ne.s32.totalorder %s27, %s43
    %p45 = scmp.eq.s32.totalorder %s19, 0
    %p46 = por %p44, %p45
    %s48 = sadd.s32 %s47, 1
    %p51 = scmp.eq.s32.totalorder %s13, 1
    %p52 = scmp.ne.s32.totalorder %s47, %s49
    %p53 = scmp.eq.s32.totalorder %s13, 0
    %p54 = por %p52, %p53
    %p55 = scmp.ne.s32.totalorder %s47, %s49
    %p56 = scmp.eq.s32.totalorder %s18, 1
    %p57 = por %p55, %p56
    %p58 = scmp.ne.s32.totalorder %s49, %s50
    %p59 = scmp.eq.s32.totalorder %s18, 0
    %p60 = por %p58, %p59
    %p61 = scmp.ne.s32.totalorder %s49, %s50
    %p62 = scmp.eq.s32.totalorder %s19, 1
    %p63 = por %p61, %p62
    %p65 = scmp.ne.s32.totalorder %s50, %s64
    %p66 = scmp.eq.s32.totalorder %s19, 0
    %p67 = por %p65, %p66
    %s69 = sadd.s32 %s68, 1
    %p72 = scmp.eq.s32.totalorder %s13, 1
    %p73 = scmp.ne.s32.totalorder %s68, %s70
    %p74 = scmp.eq.s32.totalorder %s13, 0
    %p75 = por %p73, %p74
    %p76 = scmp.ne.s32.totalorder %s68, %s70
    %p77 = scmp.eq.s32.totalorder %s18, 1
    %p78 = por %p76, %p77
    %p79 = scmp.ne.s32.totalorder %s70, %s71
    %p80 = scmp.eq.s32.totalorder %s18, 0
    %p81 = por %p79, %p80
    %p82 = scmp.ne.s32.totalorder %s70, %s71
    %p83 = scmp.eq.s32.totalorder %s19, 1
    %p84 = por %p82, %p83
    %p86 = scmp.ne.s32.totalorder %s71, %s85
    %p87 = scmp.eq.s32.totalorder %s19, 0
    %p88 = por %p86, %p87
    %s90 = sadd.s32 %s89, 1
    %p93 = scmp.eq.s32.totalorder %s13, 1
    %p94 = scmp.ne.s32.totalorder %s89, %s91
    %p95 = scmp.eq.s32.totalorder %s13, 0
    %p96 = por %p94, %p95
    %p97 = scmp.ne.s32.totalorder %s89, %s91
    %p98 = scmp.eq.s32.totalorder %s18, 1
    %p99 = por %p97, %p98
    %p100 = scmp.ne.s32.totalorder %s91, %s92
    %p101 = scmp.eq.s32.totalorder %s18, 0
    %p102 = por %p100, %p101
    %p103 = scmp.ne.s32.totalorder %s91, %s92
    %p104 = scmp.eq.s32.totalorder %s19, 1
    %p105 = por %p103, %p104
    %p107 = scmp.ne.s32.totalorder %s92, %s106
    %p108 = scmp.eq.s32.totalorder %s19, 0
    %p109 = por %p107, %p108
    %s111 = sadd.s32 %s110, 1
    %p114 = scmp.eq.s32.totalorder %s13, 1
    %p115 = scmp.ne.s32.totalorder %s110, %s112
    %p116 = scmp.eq.s32.totalorder %s13, 0
    %p117 = por %p115, %p116
    %p118 = scmp.ne.s32.totalorder %s110, %s112
    %p119 = scmp.eq.s32.totalorder %s18, 1
    %p120 = por %p118, %p119
    %p121 = scmp.ne.s32.totalorder %s112, %s113
    %p122 = scmp.eq.s32.totalorder %s18, 0
    %p123 = por %p121, %p122
    %p124 = scmp.ne.s32.totalorder %s112, %s113
    %p125 = scmp.eq.s32.totalorder %s19, 1
    %p126 = por %p124, %p125
    %p128 = scmp.ne.s32.totalorder %s113, %s127
    %p129 = scmp.eq.s32.totalorder %s19, 0
    %p130 = por %p128, %p129
    %s132 = sadd.s32 %s131, 1
    %p135 = scmp.eq.s32.totalorder %s13, 1
    %p136 = scmp.ne.s32.totalorder %s131, %s133
    %p137 = scmp.eq.s32.totalorder %s13, 0
    %p138 = por %p136, %p137
    %p139 = scmp.ne.s32.totalorder %s131, %s133
    %p140 = scmp.eq.s32.totalorder %s18, 1
    %p141 = por %p139, %p140
    %p142 = scmp.ne.s32.totalorder %s133, %s134
    %p143 = scmp.eq.s32.totalorder %s18, 0
    %p144 = por %p142, %p143
    %p145 = scmp.ne.s32.totalorder %s133, %s134
    %p146 = scmp.eq.s32.totalorder %s19, 1
    %p147 = por %p145, %p146
    %p149 = scmp.ne.s32.totalorder %s134, %s148
    %p150 = scmp.eq.s32.totalorder %s19, 0
    %p151 = por %p149, %p150
    %s153 = sadd.s32 %s152, 1
    %p156 = scmp.eq.s32.totalorder %s13, 1
    %p157 = scmp.ne.s32.totalorder %s152, %s154
    %p158 = scmp.eq.s32.totalorder %s13, 0
    %p159 = por %p157, %p158
    %p160 = scmp.ne.s32.totalorder %s152, %s154
    %p161 = scmp.eq.s32.totalorder %s18, 1
    %p162 = por %p160, %p161
    %p163 = scmp.ne.s32.totalorder %s154, %s155
    %p164 = scmp.eq.s32.totalorder %s18, 0
    %p165 = por %p163, %p164
    %p166 = scmp.ne.s32.totalorder %s154, %s155
    %p167 = scmp.eq.s32.totalorder %s19, 1
    %p168 = por %p166, %p167
    %p170 = scmp.ne.s32.totalorder %s155, %s169
    %p171 = scmp.eq.s32.totalorder %s19, 0
    %p172 = por %p170, %p171
    %s173 = ssub.s32 %s13, %s20
    %p174 = scmp.eq.s32.totalorder %s173, 0
    %s176 = sadd.s32 %s175, 1
    %s177 = scalar_select %p174, %s175, %s176
    %p180 = pneg %p174
    %p181 = scmp.eq.s32.totalorder %s13, 1
    %p182 = por %p180, %p181
    %p183 = scmp.ne.s32.totalorder %s175, %s178
    %p184 = scmp.eq.s32.totalorder %s13, 0
    %p185 = por %p183, %p184
    %p186 = scmp.ne.s32.totalorder %s175, %s178
    %p187 = scmp.eq.s32.totalorder %s18, 1
    %p188 = por %p186, %p187
    %p189 = scmp.ne.s32.totalorder %s178, %s179
    %p190 = scmp.eq.s32.totalorder %s18, 0
    %p191 = por %p189, %p190
    %p192 = scmp.ne.s32.totalorder %s178, %s179
    %p193 = scmp.eq.s32.totalorder %s19, 1
    %p194 = por %p192, %p193
    %p196 = scmp.ne.s32.totalorder %s179, %s195
    %p197 = scmp.eq.s32.totalorder %s19, 0
    %p198 = por %p196, %p197
    %p199 = scmp.le.s32.totalorder 1, %s13
    %p200 = scmp.lt.s32.totalorder %s13, 3
    %p201 = pnand %p199, %p200
    %p202 = pneg %p201
    // Predicated region
    $region9: #{tpu_custom_call.1} parent=5 // pred_check
      _
    $region10: #{tpu_custom_call.1} parent=5 // pred_check_branch
      %204 = sbr.rel (%p201) target = $region12
    $region11: #{tpu_custom_call.1} parent=5 // pred_region
      %s205 = ssub.s32 %s13, 1
      // Predicated region
      $region13: #{tpu_custom_call.1} parent=11 // pred_check
        %p206 = pneg %p60
      $region14: #{tpu_custom_call.1} parent=11 // pred_check_branch
        %208 = sbr.rel (%p206) target = $region16
      $region15: #{tpu_custom_call.1} parent=11 // pred_region
        _
      $region16: #{tpu_custom_call.1} parent=11 // pred_fallthru
        _
      // Predicated region
      $region17: #{tpu_custom_call.1} parent=11 // pred_check
        %p209 = pneg %p81
      $region18: #{tpu_custom_call.1} parent=11 // pred_check_branch
        %211 = sbr.rel (%p209) target = $region20
      $region19: #{tpu_custom_call.1} parent=11 // pred_region
        _
      $region20: #{tpu_custom_call.1} parent=11 // pred_fallthru
        _
      // Predicated region
      $region21: #{tpu_custom_call.1} parent=11 // pred_check
        %p212 = pneg %p102
      $region22: #{tpu_custom_call.1} parent=11 // pred_check_branch
        %214 = sbr.rel (%p212) target = $region24
      $region23: #{tpu_custom_call.1} parent=11 // pred_region
        _
      $region24: #{tpu_custom_call.1} parent=11 // pred_fallthru
        _
      // Predicated region
      $region25: #{tpu_custom_call.1} parent=11 // pred_check
        %p215 = pneg %p123
      $region26: #{tpu_custom_call.1} parent=11 // pred_check_branch
        %217 = sbr.rel (%p215) target = $region28
      $region27: #{tpu_custom_call.1} parent=11 // pred_region
        _
      $region28: #{tpu_custom_call.1} parent=11 // pred_fallthru
        _
      // Predicated region
      $region29: #{tpu_custom_call.1} parent=11 // pred_check
        %p218 = pneg %p144
      $region30: #{tpu_custom_call.1} parent=11 // pred_check_branch
        %220 = sbr.rel (%p218) target = $region32
      $region31: #{tpu_custom_call.1} parent=11 // pred_region
        _
      $region32: #{tpu_custom_call.1} parent=11 // pred_fallthru
        _
      // Predicated region
      $region33: #{tpu_custom_call.1} parent=11 // pred_check
        %p221 = pneg %p165
      $region34: #{tpu_custom_call.1} parent=11 // pred_check_branch
        %223 = sbr.rel (%p221) target = $region36
      $region35: #{tpu_custom_call.1} parent=11 // pred_region
        _
      $region36: #{tpu_custom_call.1} parent=11 // pred_fallthru
        _
    $region12: #{tpu_custom_call.1} parent=5 // pred_fallthru
      _
    %p224 = scmp.lt.s32.totalorder %s13, 2
    // Predicated region
    $region37: #{tpu_custom_call.1} parent=5 // pred_check
      %p225 = pneg %p224
    $region38: #{tpu_custom_call.1} parent=5 // pred_check_branch
      %227 = sbr.rel (%p225) target = $region40
    $region39: #{tpu_custom_call.1} parent=5 // pred_region
      // Predicated region
      $region41: #{tpu_custom_call.1} parent=39 // pred_check
        %p228 = pneg %p33
      $region42: #{tpu_custom_call.1} parent=39 // pred_check_branch
        %230 = sbr.rel (%p228) target = $region44
      $region43: #{tpu_custom_call.1} parent=39 // pred_region
        %s231 = smul.u32 32, %s13
        %p232 = scmp.lt.s32.totalorder %s231, 63
        %s233 = scalar_select %p232, %s231, 63
        %s234 = smul.addr %s233, 8
        %s235 = scalar_lea.vmem %s0, %s234
        %s236 = smul.u32 32, %s13
      $region44: #{tpu_custom_call.1} parent=39 // pred_fallthru
        _
    $region40: #{tpu_custom_call.1} parent=5 // pred_fallthru
      _
    %p237 = scmp.le.s32.totalorder 1, %s13
    %p238 = scmp.lt.s32.totalorder %s13, 3
    %p239 = pnand %p237, %p238
    %p240 = pneg %p239
    // Predicated region
    $region45: #{tpu_custom_call.1} parent=5 // pred_check
      _
    $region46: #{tpu_custom_call.1} parent=5 // pred_check_branch
      %242 = sbr.rel (%p239) target = $region48
    $region47: #{tpu_custom_call.1} parent=5 // pred_region
      %s243 = ssub.s32 %s13, 1
      %s244 = smul.u32 32, %s18
      %p245 = scmp.lt.s32.totalorder %s244, 63
      %s246 = scalar_select %p245, %s244, 63
      %s247 = smul.addr %s246, 8
      %s248 = scalar_lea.vmem %s0, %s247
      %p249 = pneg %p39
      %p250 = pneg %p36
      %p251 = pneg %p60
      %p252 = pneg %p57
      %p253 = pneg %p81
      %p254 = pneg %p78
      %p255 = pneg %p102
      %p256 = pneg %p99
      %p257 = pneg %p123
      %p258 = pneg %p120
      %p259 = pneg %p144
      %p260 = pneg %p141
      %p261 = pneg %p165
      %p262 = pneg %p162
      %p263 = pneg %p191
      %p264 = pneg %p188
      %s265 = smul.u32 32, %s18
      %p266 = scmp.lt.s32.totalorder %s265, 63
      %s267 = scalar_select %p266, %s265, 63
      %s268 = smul.addr %s267, 8
      %s269 = scalar_lea.vmem %s7, %s268
      %s270 = smul.u32 32, %s18
      %p271 = scmp.lt.s32.totalorder %s270, 63
      %s272 = scalar_select %p271, %s270, 63
      %s273 = smul.addr %s272, 8
      %s274 = scalar_lea.vmem %s0, %s273
      %s275 = smul.u32 32, %s18
      %s276 = smul.u32 32, %s18
      %p277 = scmp.lt.s32.totalorder %s276, 63
      %s278 = scalar_select %p277, %s276, 63
      %s279 = smul.addr %s278, 8
      %s280 = scalar_lea.vmem %s7, %s279
      %s281 = smul.u32 32, %s18
      %v282 = vld [vmem:[%s274] sm:$0xff]
      %v283 = vld [vmem:[%s274 + $0x8] sm:$0xff]
      %v284 = vld [vmem:[%s274 + $0x10] sm:$0xff]
      %v285 = vld [vmem:[%s274 + $0x18] sm:$0xff]
      %v286 = vld [vmem:[%s274 + $0x20] sm:$0xff]
      %v287 = vld [vmem:[%s274 + $0x28] sm:$0xff]
      %v288 = vld [vmem:[%s274 + $0x30] sm:$0xff]
      %v289 = vld [vmem:[%s274 + $0x38] sm:$0xff]
      %v290 = vld [vmem:[%s274 + $0x40] sm:$0xff]
      %v291 = vld [vmem:[%s274 + $0x48] sm:$0xff]
      %v292 = vld [vmem:[%s274 + $0x50] sm:$0xff]
      %v293 = vld [vmem:[%s274 + $0x58] sm:$0xff]
      %v294 = vld [vmem:[%s274 + $0x60] sm:$0xff]
      %v295 = vld [vmem:[%s274 + $0x68] sm:$0xff]
      %v296 = vld [vmem:[%s274 + $0x70] sm:$0xff]
      %v297 = vld [vmem:[%s274 + $0x78] sm:$0xff]
      %v298 = vld [vmem:[%s274 + $0x80] sm:$0xff]
      %v299 = vld [vmem:[%s274 + $0x88] sm:$0xff]
      %v300 = vld [vmem:[%s274 + $0x90] sm:$0xff]
      %v301 = vld [vmem:[%s274 + $0x98] sm:$0xff]
      %v302 = vld [vmem:[%s274 + $0xa0] sm:$0xff]
      %v303 = vld [vmem:[%s274 + $0xa8] sm:$0xff]
      %v304 = vld [vmem:[%s274 + $0xb0] sm:$0xff]
      %v305 = vld [vmem:[%s274 + $0xb8] sm:$0xff]
      %v306 = vld [vmem:[%s274 + $0xc0] sm:$0xff]
      %v307 = vld [vmem:[%s274 + $0xc8] sm:$0xff]
      %v308 = vld [vmem:[%s274 + $0xd0] sm:$0xff]
      %v309 = vld [vmem:[%s274 + $0xd8] sm:$0xff]
      %v310 = vld [vmem:[%s274 + $0xe0] sm:$0xff]
      %v311 = vld [vmem:[%s274 + $0xe8] sm:$0xff]
      %v312 = vld [vmem:[%s274 + $0xf0] sm:$0xff]
      %v313 = vld [vmem:[%s274 + $0xf8] sm:$0xff]
      %v314 = vld [vmem:[%s1] sm:$0xff]
      %v315 = vld [vmem:[%s1 + $0x8] sm:$0xff]
      %v316 = vld [vmem:[%s1 + $0x10] sm:$0xff]
      %v317 = vld [vmem:[%s1 + $0x18] sm:$0xff]
      %v318 = vld [vmem:[%s1 + $0x20] sm:$0xff]
      %v319 = vld [vmem:[%s1 + $0x28] sm:$0xff]
      %v320 = vld [vmem:[%s1 + $0x30] sm:$0xff]
      %v321 = vld [vmem:[%s1 + $0x38] sm:$0xff]
      %v322 = vld [vmem:[%s1 + $0x40] sm:$0xff]
      %v323 = vld [vmem:[%s1 + $0x48] sm:$0xff]
      %v324 = vld [vmem:[%s1 + $0x50] sm:$0xff]
      %v325 = vld [vmem:[%s1 + $0x58] sm:$0xff]
      %v326 = vld [vmem:[%s1 + $0x60] sm:$0xff]
      %v327 = vld [vmem:[%s1 + $0x68] sm:$0xff]
      %v328 = vld [vmem:[%s1 + $0x70] sm:$0xff]
      %v329 = vld [vmem:[%s1 + $0x78] sm:$0xff]
      %v330 = vld [vmem:[%s1 + $0x80] sm:$0xff]
      %v331 = vld [vmem:[%s1 + $0x88] sm:$0xff]
      %v332 = vld [vmem:[%s1 + $0x90] sm:$0xff]
      %v333 = vld [vmem:[%s1 + $0x98] sm:$0xff]
      %v334 = vld [vmem:[%s1 + $0xa0] sm:$0xff]
      %v335 = vld [vmem:[%s1 + $0xa8] sm:$0xff]
      %v336 = vld [vmem:[%s1 + $0xb0] sm:$0xff]
      %v337 = vld [vmem:[%s1 + $0xb8] sm:$0xff]
      %v338 = vld [vmem:[%s1 + $0xc0] sm:$0xff]
      %v339 = vld [vmem:[%s1 + $0xc8] sm:$0xff]
      %v340 = vld [vmem:[%s1 + $0xd0] sm:$0xff]
      %v341 = vld [vmem:[%s1 + $0xd8] sm:$0xff]
      %v342 = vld [vmem:[%s1 + $0xe0] sm:$0xff]
      %v343 = vld [vmem:[%s1 + $0xe8] sm:$0xff]
      %v344 = vld [vmem:[%s1 + $0xf0] sm:$0xff]
      %v345 = vld [vmem:[%s1 + $0xf8] sm:$0xff]
      %v346 = vld [vmem:[%s1 + $0x100] sm:$0xff]
      %v347 = vld [vmem:[%s1 + $0x108] sm:$0xff]
      %v348 = vld [vmem:[%s1 + $0x110] sm:$0xff]
      %v349 = vld [vmem:[%s1 + $0x118] sm:$0xff]
      %v350 = vld [vmem:[%s1 + $0x120] sm:$0xff]
      %v351 = vld [vmem:[%s1 + $0x128] sm:$0xff]
      %v352 = vld [vmem:[%s1 + $0x130] sm:$0xff]
      %v353 = vld [vmem:[%s1 + $0x138] sm:$0x1]
      %v354 = vld [vmem:[%s1 + $0x140] sm:$0x1]
      %v355 = vld [vmem:[%s1 + $0x148] sm:$0x1]
      %v356 = vld [vmem:[%s6] ss:$8 sm:$0x7]
      %v358 = vlaneseq
      %v359 = vshrl.u32 %v358, 7
      %v360 = vsub.s32 0, %v359
      %v361 = vrot.slane %v356, %v360
      %v362 = vlaneseq
      %v363 = vshrl.u32 %v362, 7
      %v364 = vsub.s32 1, %v363
      %v365 = vrot.slane %v356, %v364
      %v366 = vlaneseq
      %v367 = vshrl.u32 %v366, 7
      %v368 = vsub.s32 2, %v367
      %v369 = vrot.slane %v356, %v368
      %vm373 = vcmask 859136
      %v375 = vsel %vm373, %v282, 0
      %v378 = vsel %vm373, %v283, 0
      %v381 = vsel %vm373, %v284, 0
      %v384 = vsel %vm373, %v285, 0
      %v387 = vsel %vm373, %v286, 0
      %v390 = vsel %vm373, %v287, 0
      %v393 = vsel %vm373, %v288, 0
      %v396 = vsel %vm373, %v289, 0
      %v399 = vsel %vm373, %v290, 0
      %v402 = vsel %vm373, %v291, 0
      %v405 = vsel %vm373, %v292, 0
      %v408 = vsel %vm373, %v293, 0
      %v411 = vsel %vm373, %v294, 0
      %v414 = vsel %vm373, %v295, 0
      %v417 = vsel %vm373, %v296, 0
      %v420 = vsel %vm373, %v297, 0
      %v423 = vsel %vm373, %v298, 0
      %v426 = vsel %vm373, %v299, 0
      %v429 = vsel %vm373, %v300, 0
      %v432 = vsel %vm373, %v301, 0
      %v435 = vsel %vm373, %v302, 0
      %v438 = vsel %vm373, %v303, 0
      %v441 = vsel %vm373, %v304, 0
      %v444 = vsel %vm373, %v305, 0
      %v447 = vsel %vm373, %v306, 0
      %v450 = vsel %vm373, %v307, 0
      %v453 = vsel %vm373, %v308, 0
      %v456 = vsel %vm373, %v309, 0
      %v459 = vsel %vm373, %v310, 0
      %v462 = vsel %vm373, %v311, 0
      %v465 = vsel %vm373, %v312, 0
      %v468 = vsel %vm373, %v313, 0
      %vm470 = vcmask 1040384
      %v472 = vsel %vm470, %v353, 0
      %v475 = vsel %vm470, %v354, 0
      %v478 = vsel %vm470, %v355, 0
      %480 = vmatprep.subr.mxu0 %v315
      %481 = vmatpush1.msra.mxu0 %v314
      %482 = vmatprep.subr.mxu0 %v318
      %483 = vmatpush1.msra.mxu0 %v317
      %484 = vmatprep.subr.mxu0 %v321
      %485 = vmatpush1.msra.mxu0 %v320
      %486 = vmatprep.subr.mxu0 %v324
      %487 = vmatpush1.msra.mxu0 %v323
      %488 = vmatprep.subr.mxu0 %v327
      %489 = vmatpush1.msra.mxu0 %v326
      %490 = vmatprep.subr.mxu0 %v330
      %491 = vmatpush1.msra.mxu0 %v329
      %492 = vmatprep.subr.mxu0 %v333
      %493 = vmatpush1.msra.mxu0 %v332
      %494 = vmatprep.subr.mxu0 %v336
      %495 = vmatpush1.msra.mxu0 %v335
      %496 = vmatprep.subr.mxu0 %v339
      %497 = vmatpush1.msra.mxu0 %v338
      %498 = vmatprep.subr.mxu0 %v342
      %499 = vmatpush1.msra.mxu0 %v341
      %500 = vmatprep.subr.mxu0 %v345
      %501 = vmatpush1.msra.mxu0 %v344
      %502 = vmatprep.subr.mxu0 %v348
      %503 = vmatpush1.msra.mxu0 %v347
      %504 = vmatprep.subr.mxu0 %v351
      %505 = vmatpush1.msra.mxu0 %v350
      %506 = vmatprep.subr.mxu0 %v475
      %507 = vmatpush1.msra.mxu0 %v472
      %508 = vmatprep.subr.mxu0 0.0
      %509 = vmatpush1.msra.mxu0 0.0
      %510 = vmatprep.subr.mxu0 0.0
      %511 = vmatpush1.msra.mxu0 0.0
      %512 = vmatprep.subr.mxu0 0.0
      %513 = vmatpush1.msra.mxu0 0.0
      %514 = vmatprep.subr.mxu0 0.0
      %515 = vmatpush1.msra.mxu0 0.0
      %516 = vmatprep.subr.mxu0 0.0
      %517 = vmatpush1.msra.mxu0 0.0
      %518 = vmatprep.subr.mxu0 0.0
      %519 = vmatpush1.msra.mxu0 0.0
      %520 = vmatprep.subr.mxu0 0.0
      %521 = vmatpush1.msra.mxu0 0.0
      %522 = vmatprep.subr.mxu0 0.0
      %523 = vmatpush1.msra.mxu0 0.0
      %524 = vmatprep.subr.mxu0 0.0
      %525 = vmatpush1.msra.mxu0 0.0
      %526 = vmatprep.subr.mxu0 0.0
      %527 = vmatpush1.msra.mxu0 0.0
      %528 = vmatprep.subr.mxu0 0.0
      %529 = vmatpush1.msra.mxu0 0.0
      %530 = vmatprep.subr.mxu0 0.0
      %531 = vmatpush1.msra.mxu0 0.0
      %532 = vmatprep.subr.mxu0 0.0
      %533 = vmatpush1.msra.mxu0 0.0
      %534 = vmatprep.subr.mxu0 0.0
      %535 = vmatpush1.msra.mxu0 0.0
      %536 = vmatprep.subr.mxu0 0.0
      %537 = vmatpush1.msra.mxu0 0.0
      %538 = vmatprep.subr.mxu0 0.0
      %539 = vmatpush1.msra.mxu0 0.0
      %540 = vmatprep.subr.mxu0 0.0
      %541 = vmatpush1.msra.mxu0 0.0
      %542 = vmatprep.subr.mxu0 0.0
      %543 = vmatpush1.msra.mxu0 0.0
      %544 = vmatprep.mubr.f32.mxu0 0.0
      %545 = vmatmul.mubr.f32.gmra.mrb[0].mxu0 %v375
      %v546 = vpop.f32.mrb[0].mxu0
      %v547 = vadd.f32 %v361, %v546
      %v548 = vpop.f32.mrb[0].mxu0
      %v549 = vadd.f32 %v365, %v548
      %550 = vmatprep.mubr.f32.mxu0 0.0
      %551 = vmatmul.mubr.f32.gmra.mrb[0].mxu0 %v378
      %v552 = vpop.f32.mrb[0].mxu0
      %v553 = vadd.f32 %v361, %v552
      %v554 = vpop.f32.mrb[0].mxu0
      %v555 = vadd.f32 %v365, %v554
      %556 = vmatprep.mubr.f32.mxu0 0.0
      %557 = vmatmul.mubr.f32.gmra.mrb[0].mxu0 %v381
      %v558 = vpop.f32.mrb[0].mxu0
      %v559 = vadd.f32 %v361, %v558
      %v560 = vpop.f32.mrb[0].mxu0
      %v561 = vadd.f32 %v365, %v560
      %562 = vmatprep.mubr.f32.mxu0 0.0
      %563 = vmatmul.mubr.f32.gmra.mrb[0].mxu0 %v384
      %v564 = vpop.f32.mrb[0].mxu0
      %v565 = vadd.f32 %v361, %v564
      %v566 = vpop.f32.mrb[0].mxu0
      %v567 = vadd.f32 %v365, %v566
      %568 = vmatprep.mubr.f32.mxu0 0.0
      %569 = vmatmul.mubr.f32.gmra.mrb[0].mxu0 %v387
      %v570 = vpop.f32.mrb[0].mxu0
      %v571 = vadd.f32 %v361, %v570
      %v572 = vpop.f32.mrb[0].mxu0
      %v573 = vadd.f32 %v365, %v572
      %574 = vmatprep.mubr.f32.mxu0 0.0
      %575 = vmatmul.mubr.f32.gmra.mrb[0].mxu0 %v390
      %v576 = vpop.f32.mrb[0].mxu0
      %v577 = vadd.f32 %v361, %v576
      %v578 = vpop.f32.mrb[0].mxu0
      %v579 = vadd.f32 %v365, %v578
      %580 = vmatprep.mubr.f32.mxu0 0.0
      %581 = vmatmul.mubr.f32.gmra.mrb[0].mxu0 %v393
      %v582 = vpop.f32.mrb[0].mxu0
      %v583 = vadd.f32 %v361, %v582
      %v584 = vpop.f32.mrb[0].mxu0
      %v585 = vadd.f32 %v365, %v584
      %586 = vmatprep.mubr.f32.mxu0 0.0
      %587 = vmatmul.mubr.f32.gmra.mrb[0].mxu0 %v396
      %v588 = vpop.f32.mrb[0].mxu0
      %v589 = vadd.f32 %v361, %v588
      %v590 = vpop.f32.mrb[0].mxu0
      %v591 = vadd.f32 %v365, %v590
      %592 = vmatprep.mubr.f32.mxu0 0.0
      %593 = vmatmul.mubr.f32.gmra.mrb[0].mxu0 %v399
      %v594 = vpop.f32.mrb[0].mxu0
      %v595 = vadd.f32 %v361, %v594
      %v596 = vpop.f32.mrb[0].mxu0
      %v597 = vadd.f32 %v365, %v596
      %598 = vmatprep.mubr.f32.mxu0 0.0
      %599 = vmatmul.mubr.f32.gmra.mrb[0].mxu0 %v402
      %v600 = vpop.f32.mrb[0].mxu0
      %v601 = vadd.f32 %v361, %v600
      %v602 = vpop.f32.mrb[0].mxu0
      %v603 = vadd.f32 %v365, %v602
      %604 = vmatprep.mubr.f32.mxu0 0.0
      %605 = vmatmul.mubr.f32.gmra.mrb[0].mxu0 %v405
      %v606 = vpop.f32.mrb[0].mxu0
      %v607 = vadd.f32 %v361, %v606
      %v608 = vpop.f32.mrb[0].mxu0
      %v609 = vadd.f32 %v365, %v608
      %610 = vmatprep.mubr.f32.mxu0 0.0
      %611 = vmatmul.mubr.f32.gmra.mrb[0].mxu0 %v408
      %v612 = vpop.f32.mrb[0].mxu0
      %v613 = vadd.f32 %v361, %v612
      %v614 = vpop.f32.mrb[0].mxu0
      %v615 = vadd.f32 %v365, %v614
      %616 = vmatprep.mubr.f32.mxu0 0.0
      %617 = vmatmul.mubr.f32.gmra.mrb[0].mxu0 %v411
      %v618 = vpop.f32.mrb[0].mxu0
      %v619 = vadd.f32 %v361, %v618
      %v620 = vpop.f32.mrb[0].mxu0
      %v621 = vadd.f32 %v365, %v620
      %622 = vmatprep.mubr.f32.mxu0 0.0
      %623 = vmatmul.mubr.f32.gmra.mrb[0].mxu0 %v414
      %v624 = vpop.f32.mrb[0].mxu0
      %v625 = vadd.f32 %v361, %v624
      %v626 = vpop.f32.mrb[0].mxu0
      %v627 = vadd.f32 %v365, %v626
      %628 = vmatprep.mubr.f32.mxu0 0.0
      %629 = vmatmul.mubr.f32.gmra.mrb[0].mxu0 %v417
      %v630 = vpop.f32.mrb[0].mxu0
      %v631 = vadd.f32 %v361, %v630
      %v632 = vpop.f32.mrb[0].mxu0
      %v633 = vadd.f32 %v365, %v632
      %634 = vmatprep.mubr.f32.mxu0 0.0
      %635 = vmatmul.mubr.f32.gmra.mrb[0].mxu0 %v420
      %v636 = vpop.f32.mrb[0].mxu0
      %v637 = vadd.f32 %v361, %v636
      %v638 = vpop.f32.mrb[0].mxu0
      %v639 = vadd.f32 %v365, %v638
      %640 = vmatprep.mubr.f32.mxu0 0.0
      %641 = vmatmul.mubr.f32.gmra.mrb[0].mxu0 %v423
      %v642 = vpop.f32.mrb[0].mxu0
      %v643 = vadd.f32 %v361, %v642
      %v644 = vpop.f32.mrb[0].mxu0
      %v645 = vadd.f32 %v365, %v644
      %646 = vmatprep.mubr.f32.mxu0 0.0
      %647 = vmatmul.mubr.f32.gmra.mrb[0].mxu0 %v426
      %v648 = vpop.f32.mrb[0].mxu0
      %v649 = vadd.f32 %v361, %v648
      %v650 = vpop.f32.mrb[0].mxu0
      %v651 = vadd.f32 %v365, %v650
      %652 = vmatprep.mubr.f32.mxu0 0.0
      %653 = vmatmul.mubr.f32.gmra.mrb[0].mxu0 %v429
      %v654 = vpop.f32.mrb[0].mxu0
      %v655 = vadd.f32 %v361, %v654
      %v656 = vpop.f32.mrb[0].mxu0
      %v657 = vadd.f32 %v365, %v656
      %658 = vmatprep.mubr.f32.mxu0 0.0
      %659 = vmatmul.mubr.f32.gmra.mrb[0].mxu0 %v432
      %v660 = vpop.f32.mrb[0].mxu0
      %v661 = vadd.f32 %v361, %v660
      %v662 = vpop.f32.mrb[0].mxu0
      %v663 = vadd.f32 %v365, %v662
      %664 = vmatprep.mubr.f32.mxu0 0.0
      %665 = vmatmul.mubr.f32.gmra.mrb[0].mxu0 %v435
      %v666 = vpop.f32.mrb[0].mxu0
      %v667 = vadd.f32 %v361, %v666
      %v668 = vpop.f32.mrb[0].mxu0
      %v669 = vadd.f32 %v365, %v668
      %670 = vmatprep.mubr.f32.mxu0 0.0
      %671 = vmatmul.mubr.f32.gmra.mrb[0].mxu0 %v438
      %v672 = vpop.f32.mrb[0].mxu0
      %v673 = vadd.f32 %v361, %v672
      %v674 = vpop.f32.mrb[0].mxu0
      %v675 = vadd.f32 %v365, %v674
      %676 = vmatprep.mubr.f32.mxu0 0.0
      %677 = vmatmul.mubr.f32.gmra.mrb[0].mxu0 %v441
      %v678 = vpop.f32.mrb[0].mxu0
      %v679 = vadd.f32 %v361, %v678
      %v680 = vpop.f32.mrb[0].mxu0
      %v681 = vadd.f32 %v365, %v680
      %682 = vmatprep.mubr.f32.mxu0 0.0
      %683 = vmatmul.mubr.f32.gmra.mrb[0].mxu0 %v444
      %v684 = vpop.f32.mrb[0].mxu0
      %v685 = vadd.f32 %v361, %v684
      %v686 = vpop.f32.mrb[0].mxu0
      %v687 = vadd.f32 %v365, %v686
      %688 = vmatprep.mubr.f32.mxu0 0.0
      %689 = vmatmul.mubr.f32.gmra.mrb[0].mxu0 %v447
      %v690 = vpop.f32.mrb[0].mxu0
      %v691 = vadd.f32 %v361, %v690
      %v692 = vpop.f32.mrb[0].mxu0
      %v693 = vadd.f32 %v365, %v692
      %694 = vmatprep.mubr.f32.mxu0 0.0
      %695 = vmatmul.mubr.f32.gmra.mrb[0].mxu0 %v450
      %v696 = vpop.f32.mrb[0].mxu0
      %v697 = vadd.f32 %v361, %v696
      %v698 = vpop.f32.mrb[0].mxu0
      %v699 = vadd.f32 %v365, %v698
      %700 = vmatprep.mubr.f32.mxu0 0.0
      %701 = vmatmul.mubr.f32.gmra.mrb[0].mxu0 %v453
      %v702 = vpop.f32.mrb[0].mxu0
      %v703 = vadd.f32 %v361, %v702
      %v704 = vpop.f32.mrb[0].mxu0
      %v705 = vadd.f32 %v365, %v704
      %706 = vmatprep.mubr.f32.mxu0 0.0
      %707 = vmatmul.mubr.f32.gmra.mrb[0].mxu0 %v456
      %v708 = vpop.f32.mrb[0].mxu0
      %v709 = vadd.f32 %v361, %v708
      %v710 = vpop.f32.mrb[0].mxu0
      %v711 = vadd.f32 %v365, %v710
      %712 = vmatprep.mubr.f32.mxu0 0.0
      %713 = vmatmul.mubr.f32.gmra.mrb[0].mxu0 %v459
      %v714 = vpop.f32.mrb[0].mxu0
      %v715 = vadd.f32 %v361, %v714
      %v716 = vpop.f32.mrb[0].mxu0
      %v717 = vadd.f32 %v365, %v716
      %718 = vmatprep.mubr.f32.mxu0 0.0
      %719 = vmatmul.mubr.f32.gmra.mrb[0].mxu0 %v462
      %v720 = vpop.f32.mrb[0].mxu0
      %v721 = vadd.f32 %v361, %v720
      %v722 = vpop.f32.mrb[0].mxu0
      %v723 = vadd.f32 %v365, %v722
      %724 = vmatprep.mubr.f32.mxu0 0.0
      %725 = vmatmul.mubr.f32.gmra.mrb[0].mxu0 %v465
      %v726 = vpop.f32.mrb[0].mxu0
      %v727 = vadd.f32 %v361, %v726
      %v728 = vpop.f32.mrb[0].mxu0
      %v729 = vadd.f32 %v365, %v728
      %730 = vmatprep.mubr.f32.mxu0 0.0
      %731 = vmatmul.mubr.f32.gmra.mrb[0].mxu0 %v468
      %v732 = vpop.f32.mrb[0].mxu0
      %v733 = vadd.f32 %v361, %v732
      %v734 = vpop.f32.mrb[0].mxu0
      %v735 = vadd.f32 %v365, %v734
      %736 = vdwg.mxu0
      %737 = vmatprep.subr.mxu0 0.0
      %738 = vmatpush1.msra.mxu0 %v316
      %739 = vmatprep.subr.mxu0 0.0
      %740 = vmatpush1.msra.mxu0 %v319
      %741 = vmatprep.subr.mxu0 0.0
      %742 = vmatpush1.msra.mxu0 %v322
      %743 = vmatprep.subr.mxu0 0.0
      %744 = vmatpush1.msra.mxu0 %v325
      %745 = vmatprep.subr.mxu0 0.0
      %746 = vmatpush1.msra.mxu0 %v328
      %747 = vmatprep.subr.mxu0 0.0
      %748 = vmatpush1.msra.mxu0 %v331
      %749 = vmatprep.subr.mxu0 0.0
      %750 = vmatpush1.msra.mxu0 %v334
      %751 = vmatprep.subr.mxu0 0.0
      %752 = vmatpush1.msra.mxu0 %v337
      %753 = vmatprep.subr.mxu0 0.0
      %754 = vmatpush1.msra.mxu0 %v340
      %755 = vmatprep.subr.mxu0 0.0
      %756 = vmatpush1.msra.mxu0 %v343
      %757 = vmatprep.subr.mxu0 0.0
      %758 = vmatpush1.msra.mxu0 %v346
      %759 = vmatprep.subr.mxu0 0.0
      %760 = vmatpush1.msra.mxu0 %v349
      %761 = vmatprep.subr.mxu0 0.0
      %762 = vmatpush1.msra.mxu0 %v352
      %763 = vmatprep.subr.mxu0 0.0
      %764 = vmatpush1.msra.mxu0 %v478
      %765 = vmatprep.subr.mxu0 0.0
      %766 = vmatpush1.msra.mxu0 0.0
      %767 = vmatprep.subr.mxu0 0.0
      %768 = vmatpush1.msra.mxu0 0.0
      %769 = vmatprep.subr.mxu0 0.0
      %770 = vmatpush1.msra.mxu0 0.0
      %771 = vmatprep.subr.mxu0 0.0
      %772 = vmatpush1.msra.mxu0 0.0
      %773 = vmatprep.subr.mxu0 0.0
      %774 = vmatpush1.msra.mxu0 0.0
      %775 = vmatprep.subr.mxu0 0.0
      %776 = vmatpush1.msra.mxu0 0.0
      %777 = vmatprep.subr.mxu0 0.0
      %778 = vmatpush1.msra.mxu0 0.0
      %779 = vmatprep.subr.mxu0 0.0
      %780 = vmatpush1.msra.mxu0 0.0
      %781 = vmatprep.subr.mxu0 0.0
      %782 = vmatpush1.msra.mxu0 0.0
      %783 = vmatprep.subr.mxu0 0.0
      %784 = vmatpush1.msra.mxu0 0.0
      %785 = vmatprep.subr.mxu0 0.0
      %786 = vmatpush1.msra.mxu0 0.0
      %787 = vmatprep.subr.mxu0 0.0
      %788 = vmatpush1.msra.mxu0 0.0
      %789 = vmatprep.subr.mxu0 0.0
      %790 = vmatpush1.msra.mxu0 0.0
      %791 = vmatprep.subr.mxu0 0.0
      %792 = vmatpush1.msra.mxu0 0.0
      %793 = vmatprep.subr.mxu0 0.0
      %794 = vmatpush1.msra.mxu0 0.0
      %795 = vmatprep.subr.mxu0 0.0
      %796 = vmatpush1.msra.mxu0 0.0
      %797 = vmatprep.subr.mxu0 0.0
      %798 = vmatpush1.msra.mxu0 0.0
      %799 = vmatprep.subr.mxu0 0.0
      %800 = vmatpush1.msra.mxu0 0.0
      %801 = vmatprep.mubr.f32.mxu0 0.0
      %802 = vmatmul.mubr.f32.gmra.mrb[0].mxu0 %v375
      %v803 = vpop.f32.mrb[0].mxu0
      %v804 = vadd.f32 %v369, %v803
      %v805 = vpop.f32.mrb[0].mxu0
      %806 = vmatprep.mubr.f32.mxu0 0.0
      %807 = vmatmul.mubr.f32.gmra.mrb[0].mxu0 %v378
      %v808 = vpop.f32.mrb[0].mxu0
      %v809 = vadd.f32 %v369, %v808
      %v810 = vpop.f32.mrb[0].mxu0
      %811 = vmatprep.mubr.f32.mxu0 0.0
      %812 = vmatmul.mubr.f32.gmra.mrb[0].mxu0 %v381
      %v813 = vpop.f32.mrb[0].mxu0
      %v814 = vadd.f32 %v369, %v813
      %v815 = vpop.f32.mrb[0].mxu0
      %816 = vmatprep.mubr.f32.mxu0 0.0
      %817 = vmatmul.mubr.f32.gmra.mrb[0].mxu0 %v384
      %v818 = vpop.f32.mrb[0].mxu0
      %v819 = vadd.f32 %v369, %v818
      %v820 = vpop.f32.mrb[0].mxu0
      %821 = vmatprep.mubr.f32.mxu0 0.0
      %822 = vmatmul.mubr.f32.gmra.mrb[0].mxu0 %v387
      %v823 = vpop.f32.mrb[0].mxu0
      %v824 = vadd.f32 %v369, %v823
      %v825 = vpop.f32.mrb[0].mxu0
      %826 = vmatprep.mubr.f32.mxu0 0.0
      %827 = vmatmul.mubr.f32.gmra.mrb[0].mxu0 %v390
      %v828 = vpop.f32.mrb[0].mxu0
      %v829 = vadd.f32 %v369, %v828
      %v830 = vpop.f32.mrb[0].mxu0
      %831 = vmatprep.mubr.f32.mxu0 0.0
      %832 = vmatmul.mubr.f32.gmra.mrb[0].mxu0 %v393
      %v833 = vpop.f32.mrb[0].mxu0
      %v834 = vadd.f32 %v369, %v833
      %v835 = vpop.f32.mrb[0].mxu0
      %836 = vmatprep.mubr.f32.mxu0 0.0
      %837 = vmatmul.mubr.f32.gmra.mrb[0].mxu0 %v396
      %v838 = vpop.f32.mrb[0].mxu0
      %v839 = vadd.f32 %v369, %v838
      %v840 = vpop.f32.mrb[0].mxu0
      %841 = vmatprep.mubr.f32.mxu0 0.0
      %842 = vmatmul.mubr.f32.gmra.mrb[0].mxu0 %v399
      %v843 = vpop.f32.mrb[0].mxu0
      %v844 = vadd.f32 %v369, %v843
      %v845 = vpop.f32.mrb[0].mxu0
      %846 = vmatprep.mubr.f32.mxu0 0.0
      %847 = vmatmul.mubr.f32.gmra.mrb[0].mxu0 %v402
      %v848 = vpop.f32.mrb[0].mxu0
      %v849 = vadd.f32 %v369, %v848
      %v850 = vpop.f32.mrb[0].mxu0
      %851 = vmatprep.mubr.f32.mxu0 0.0
      %852 = vmatmul.mubr.f32.gmra.mrb[0].mxu0 %v405
      %v853 = vpop.f32.mrb[0].mxu0
      %v854 = vadd.f32 %v369, %v853
      %v855 = vpop.f32.mrb[0].mxu0
      %856 = vmatprep.mubr.f32.mxu0 0.0
      %857 = vmatmul.mubr.f32.gmra.mrb[0].mxu0 %v408
      %v858 = vpop.f32.mrb[0].mxu0
      %v859 = vadd.f32 %v369, %v858
      %v860 = vpop.f32.mrb[0].mxu0
      %861 = vmatprep.mubr.f32.mxu0 0.0
      %862 = vmatmul.mubr.f32.gmra.mrb[0].mxu0 %v411
      %v863 = vpop.f32.mrb[0].mxu0
      %v864 = vadd.f32 %v369, %v863
      %v865 = vpop.f32.mrb[0].mxu0
      %866 = vmatprep.mubr.f32.mxu0 0.0
      %867 = vmatmul.mubr.f32.gmra.mrb[0].mxu0 %v414
      %v868 = vpop.f32.mrb[0].mxu0
      %v869 = vadd.f32 %v369, %v868
      %v870 = vpop.f32.mrb[0].mxu0
      %871 = vmatprep.mubr.f32.mxu0 0.0
      %872 = vmatmul.mubr.f32.gmra.mrb[0].mxu0 %v417
      %v873 = vpop.f32.mrb[0].mxu0
      %v874 = vadd.f32 %v369, %v873
      %v875 = vpop.f32.mrb[0].mxu0
      %876 = vmatprep.mubr.f32.mxu0 0.0
      %877 = vmatmul.mubr.f32.gmra.mrb[0].mxu0 %v420
      %v878 = vpop.f32.mrb[0].mxu0
      %v879 = vadd.f32 %v369, %v878
      %v880 = vpop.f32.mrb[0].mxu0
      %881 = vmatprep.mubr.f32.mxu0 0.0
      %882 = vmatmul.mubr.f32.gmra.mrb[0].mxu0 %v423
      %v883 = vpop.f32.mrb[0].mxu0
      %v884 = vadd.f32 %v369, %v883
      %v885 = vpop.f32.mrb[0].mxu0
      %886 = vmatprep.mubr.f32.mxu0 0.0
      %887 = vmatmul.mubr.f32.gmra.mrb[0].mxu0 %v426
      %v888 = vpop.f32.mrb[0].mxu0
      %v889 = vadd.f32 %v369, %v888
      %v890 = vpop.f32.mrb[0].mxu0
      %891 = vmatprep.mubr.f32.mxu0 0.0
      %892 = vmatmul.mubr.f32.gmra.mrb[0].mxu0 %v429
      %v893 = vpop.f32.mrb[0].mxu0
      %v894 = vadd.f32 %v369, %v893
      %v895 = vpop.f32.mrb[0].mxu0
      %896 = vmatprep.mubr.f32.mxu0 0.0
      %897 = vmatmul.mubr.f32.gmra.mrb[0].mxu0 %v432
      %v898 = vpop.f32.mrb[0].mxu0
      %v899 = vadd.f32 %v369, %v898
      %v900 = vpop.f32.mrb[0].mxu0
      %901 = vmatprep.mubr.f32.mxu0 0.0
      %902 = vmatmul.mubr.f32.gmra.mrb[0].mxu0 %v435
      %v903 = vpop.f32.mrb[0].mxu0
      %v904 = vadd.f32 %v369, %v903
      %v905 = vpop.f32.mrb[0].mxu0
      %906 = vmatprep.mubr.f32.mxu0 0.0
      %907 = vmatmul.mubr.f32.gmra.mrb[0].mxu0 %v438
      %v908 = vpop.f32.mrb[0].mxu0
      %v909 = vadd.f32 %v369, %v908
      %v910 = vpop.f32.mrb[0].mxu0
      %911 = vmatprep.mubr.f32.mxu0 0.0
      %912 = vmatmul.mubr.f32.gmra.mrb[0].mxu0 %v441
      %v913 = vpop.f32.mrb[0].mxu0
      %v914 = vadd.f32 %v369, %v913
      %v915 = vpop.f32.mrb[0].mxu0
      %916 = vmatprep.mubr.f32.mxu0 0.0
      %917 = vmatmul.mubr.f32.gmra.mrb[0].mxu0 %v444
      %v918 = vpop.f32.mrb[0].mxu0
      %v919 = vadd.f32 %v369, %v918
      %v920 = vpop.f32.mrb[0].mxu0
      %921 = vmatprep.mubr.f32.mxu0 0.0
      %922 = vmatmul.mubr.f32.gmra.mrb[0].mxu0 %v447
      %v923 = vpop.f32.mrb[0].mxu0
      %v924 = vadd.f32 %v369, %v923
      %v925 = vpop.f32.mrb[0].mxu0
      %926 = vmatprep.mubr.f32.mxu0 0.0
      %927 = vmatmul.mubr.f32.gmra.mrb[0].mxu0 %v450
      %v928 = vpop.f32.mrb[0].mxu0
      %v929 = vadd.f32 %v369, %v928
      %v930 = vpop.f32.mrb[0].mxu0
      %931 = vmatprep.mubr.f32.mxu0 0.0
      %932 = vmatmul.mubr.f32.gmra.mrb[0].mxu0 %v453
      %v933 = vpop.f32.mrb[0].mxu0
      %v934 = vadd.f32 %v369, %v933
      %v935 = vpop.f32.mrb[0].mxu0
      %936 = vmatprep.mubr.f32.mxu0 0.0
      %937 = vmatmul.mubr.f32.gmra.mrb[0].mxu0 %v456
      %v938 = vpop.f32.mrb[0].mxu0
      %v939 = vadd.f32 %v369, %v938
      %v940 = vpop.f32.mrb[0].mxu0
      %941 = vmatprep.mubr.f32.mxu0 0.0
      %942 = vmatmul.mubr.f32.gmra.mrb[0].mxu0 %v459
      %v943 = vpop.f32.mrb[0].mxu0
      %v944 = vadd.f32 %v369, %v943
      %v945 = vpop.f32.mrb[0].mxu0
      %946 = vmatprep.mubr.f32.mxu0 0.0
      %947 = vmatmul.mubr.f32.gmra.mrb[0].mxu0 %v462
      %v948 = vpop.f32.mrb[0].mxu0
      %v949 = vadd.f32 %v369, %v948
      %v950 = vpop.f32.mrb[0].mxu0
      %951 = vmatprep.mubr.f32.mxu0 0.0
      %952 = vmatmul.mubr.f32.gmra.mrb[0].mxu0 %v465
      %v953 = vpop.f32.mrb[0].mxu0
      %v954 = vadd.f32 %v369, %v953
      %v955 = vpop.f32.mrb[0].mxu0
      %956 = vmatprep.mubr.f32.mxu0 0.0
      %957 = vmatmul.mubr.f32.gmra.mrb[0].mxu0 %v468
      %v958 = vpop.f32.mrb[0].mxu0
      %v959 = vadd.f32 %v369, %v958
      %v960 = vpop.f32.mrb[0].mxu0
      %961 = vdwg.mxu0
      %v962 = vmax.f32 %v547, 0.0
      %v963 = vmax.f32 %v549, 0.0
      %v964 = vmax.f32 %v804, 0.0
      %v965 = vmax.f32 %v553, 0.0
      %v966 = vmax.f32 %v555, 0.0
      %v967 = vmax.f32 %v809, 0.0
      %v968 = vmax.f32 %v559, 0.0
      %v969 = vmax.f32 %v561, 0.0
      %v970 = vmax.f32 %v814, 0.0
      %v971 = vmax.f32 %v565, 0.0
      %v972 = vmax.f32 %v567, 0.0
      %v973 = vmax.f32 %v819, 0.0
      %v974 = vmax.f32 %v571, 0.0
      %v975 = vmax.f32 %v573, 0.0
      %v976 = vmax.f32 %v824, 0.0
      %v977 = vmax.f32 %v577, 0.0
      %v978 = vmax.f32 %v579, 0.0
      %v979 = vmax.f32 %v829, 0.0
      %v980 = vmax.f32 %v583, 0.0
      %v981 = vmax.f32 %v585, 0.0
      %v982 = vmax.f32 %v834, 0.0
      %v983 = vmax.f32 %v589, 0.0
      %v984 = vmax.f32 %v591, 0.0
      %v985 = vmax.f32 %v839, 0.0
      %v986 = vmax.f32 %v595, 0.0
      %v987 = vmax.f32 %v597, 0.0
      %v988 = vmax.f32 %v844, 0.0
      %v989 = vmax.f32 %v601, 0.0
      %v990 = vmax.f32 %v603, 0.0
      %v991 = vmax.f32 %v849, 0.0
      %v992 = vmax.f32 %v607, 0.0
      %v993 = vmax.f32 %v609, 0.0
      %v994 = vmax.f32 %v854, 0.0
      %v995 = vmax.f32 %v613, 0.0
      %v996 = vmax.f32 %v615, 0.0
      %v997 = vmax.f32 %v859, 0.0
      %v998 = vmax.f32 %v619, 0.0
      %v999 = vmax.f32 %v621, 0.0
      %v1000 = vmax.f32 %v864, 0.0
      %v1001 = vmax.f32 %v625, 0.0
      %v1002 = vmax.f32 %v627, 0.0
      %v1003 = vmax.f32 %v869, 0.0
      %v1004 = vmax.f32 %v631, 0.0
      %v1005 = vmax.f32 %v633, 0.0
      %v1006 = vmax.f32 %v874, 0.0
      %v1007 = vmax.f32 %v637, 0.0
      %v1008 = vmax.f32 %v639, 0.0
      %v1009 = vmax.f32 %v879, 0.0
      %v1010 = vmax.f32 %v643, 0.0
      %v1011 = vmax.f32 %v645, 0.0
      %v1012 = vmax.f32 %v884, 0.0
      %v1013 = vmax.f32 %v649, 0.0
      %v1014 = vmax.f32 %v651, 0.0
      %v1015 = vmax.f32 %v889, 0.0
      %v1016 = vmax.f32 %v655, 0.0
      %v1017 = vmax.f32 %v657, 0.0
      %v1018 = vmax.f32 %v894, 0.0
      %v1019 = vmax.f32 %v661, 0.0
      %v1020 = vmax.f32 %v663, 0.0
      %v1021 = vmax.f32 %v899, 0.0
      %v1022 = vmax.f32 %v667, 0.0
      %v1023 = vmax.f32 %v669, 0.0
      %v1024 = vmax.f32 %v904, 0.0
      %v1025 = vmax.f32 %v673, 0.0
      %v1026 = vmax.f32 %v675, 0.0
      %v1027 = vmax.f32 %v909, 0.0
      %v1028 = vmax.f32 %v679, 0.0
      %v1029 = vmax.f32 %v681, 0.0
      %v1030 = vmax.f32 %v914, 0.0
      %v1031 = vmax.f32 %v685, 0.0
      %v1032 = vmax.f32 %v687, 0.0
      %v1033 = vmax.f32 %v919, 0.0
      %v1034 = vmax.f32 %v691, 0.0
      %v1035 = vmax.f32 %v693, 0.0
      %v1036 = vmax.f32 %v924, 0.0
      %v1037 = vmax.f32 %v697, 0.0
      %v1038 = vmax.f32 %v699, 0.0
      %v1039 = vmax.f32 %v929, 0.0
      %v1040 = vmax.f32 %v703, 0.0
      %v1041 = vmax.f32 %v705, 0.0
      %v1042 = vmax.f32 %v934, 0.0
      %v1043 = vmax.f32 %v709, 0.0
      %v1044 = vmax.f32 %v711, 0.0
      %v1045 = vmax.f32 %v939, 0.0
      %v1046 = vmax.f32 %v715, 0.0
      %v1047 = vmax.f32 %v717, 0.0
      %v1048 = vmax.f32 %v944, 0.0
      %v1049 = vmax.f32 %v721, 0.0
      %v1050 = vmax.f32 %v723, 0.0
      %v1051 = vmax.f32 %v949, 0.0
      %v1052 = vmax.f32 %v727, 0.0
      %v1053 = vmax.f32 %v729, 0.0
      %v1054 = vmax.f32 %v954, 0.0
      %v1055 = vmax.f32 %v733, 0.0
      %v1056 = vmax.f32 %v735, 0.0
      %v1057 = vmax.f32 %v959, 0.0
      %v1058 = vld [vmem:[%s2] sm:$0xff]
      %v1059 = vld [vmem:[%s2 + $0x8] sm:$0xff]
      %v1060 = vld [vmem:[%s2 + $0x10] sm:$0xff]
      %v1061 = vld [vmem:[%s2 + $0x18] sm:$0xff]
      %v1062 = vld [vmem:[%s2 + $0x20] sm:$0xff]
      %v1063 = vld [vmem:[%s2 + $0x28] sm:$0xff]
      %v1064 = vld [vmem:[%s2 + $0x30] sm:$0xff]
      %v1065 = vld [vmem:[%s2 + $0x38] sm:$0xff]
      %v1066 = vld [vmem:[%s2 + $0x40] sm:$0xff]
      %v1067 = vld [vmem:[%s2 + $0x48] sm:$0xff]
      %v1068 = vld [vmem:[%s2 + $0x50] sm:$0xff]
      %v1069 = vld [vmem:[%s2 + $0x58] sm:$0xff]
      %v1070 = vld [vmem:[%s2 + $0x60] sm:$0xff]
      %v1071 = vld [vmem:[%s2 + $0x68] sm:$0xff]
      %v1072 = vld [vmem:[%s2 + $0x70] sm:$0xff]
      %v1073 = vld [vmem:[%s2 + $0x78] sm:$0xff]
      %v1074 = vld [vmem:[%s2 + $0x80] sm:$0xff]
      %v1075 = vld [vmem:[%s2 + $0x88] sm:$0xff]
      %v1076 = vld [vmem:[%s2 + $0x90] sm:$0xff]
      %v1077 = vld [vmem:[%s2 + $0x98] sm:$0xff]
      %v1078 = vld [vmem:[%s2 + $0xa0] sm:$0xff]
      %v1079 = vld [vmem:[%s2 + $0xa8] sm:$0xff]
      %v1080 = vld [vmem:[%s2 + $0xb0] sm:$0xff]
      %v1081 = vld [vmem:[%s2 + $0xb8] sm:$0xff]
      %v1082 = vld [vmem:[%s2 + $0xc0] sm:$0xff]
      %v1083 = vld [vmem:[%s2 + $0xc8] sm:$0xff]
      %v1084 = vld [vmem:[%s2 + $0xd0] sm:$0xff]
      %v1085 = vld [vmem:[%s2 + $0xd8] sm:$0xff]
      %v1086 = vld [vmem:[%s2 + $0xe0] sm:$0xff]
      %v1087 = vld [vmem:[%s2 + $0xe8] sm:$0xff]
      %v1088 = vld [vmem:[%s2 + $0xf0] sm:$0xff]
      %v1089 = vld [vmem:[%s2 + $0xf8] sm:$0xff]
      %v1090 = vld [vmem:[%s2 + $0x100] sm:$0xff]
      %v1091 = vld [vmem:[%s2 + $0x108] sm:$0xff]
      %v1092 = vld [vmem:[%s2 + $0x110] sm:$0xff]
      %v1093 = vld [vmem:[%s2 + $0x118] sm:$0xff]
      %v1094 = vld [vmem:[%s2 + $0x120] sm:$0xff]
      %v1095 = vld [vmem:[%s2 + $0x128] sm:$0xff]
      %v1096 = vld [vmem:[%s2 + $0x130] sm:$0xff]
      %v1097 = vld [vmem:[%s2 + $0x138] sm:$0xff]
      %v1098 = vld [vmem:[%s2 + $0x140] sm:$0xff]
      %v1099 = vld [vmem:[%s2 + $0x148] sm:$0x3]
      %v1100 = vld [vmem:[%s6 + $0x1] ss:$0 sm:$0xff]
      %vm1101 = vcmask 605184
      %v1103 = vsel %vm1101, %v964, 0
      %v1106 = vsel %vm1101, %v967, 0
      %v1109 = vsel %vm1101, %v970, 0
      %v1112 = vsel %vm1101, %v973, 0
      %v1115 = vsel %vm1101, %v976, 0
      %v1118 = vsel %vm1101, %v979, 0
      %v1121 = vsel %vm1101, %v982, 0
      %v1124 = vsel %vm1101, %v985, 0
      %v1127 = vsel %vm1101, %v988, 0
      %v1130 = vsel %vm1101, %v991, 0
      %v1133 = vsel %vm1101, %v994, 0
      %v1136 = vsel %vm1101, %v997, 0
      %v1139 = vsel %vm1101, %v1000, 0
      %v1142 = vsel %vm1101, %v1003, 0
      %v1145 = vsel %vm1101, %v1006, 0
      %v1148 = vsel %vm1101, %v1009, 0
      %v1151 = vsel %vm1101, %v1012, 0
      %v1154 = vsel %vm1101, %v1015, 0
      %v1157 = vsel %vm1101, %v1018, 0
      %v1160 = vsel %vm1101, %v1021, 0
      %v1163 = vsel %vm1101, %v1024, 0
      %v1166 = vsel %vm1101, %v1027, 0
      %v1169 = vsel %vm1101, %v1030, 0
      %v1172 = vsel %vm1101, %v1033, 0
      %v1175 = vsel %vm1101, %v1036, 0
      %v1178 = vsel %vm1101, %v1039, 0
      %v1181 = vsel %vm1101, %v1042, 0
      %v1184 = vsel %vm1101, %v1045, 0
      %v1187 = vsel %vm1101, %v1048, 0
      %v1190 = vsel %vm1101, %v1051, 0
      %v1193 = vsel %vm1101, %v1054, 0
      %v1196 = vsel %vm1101, %v1057, 0
      %vm1198 = vcmask 1041408
      %v1200 = vsel %vm1198, %v1099, 0
      %1202 = vmatprep.subr.mxu0 0.0
      %1203 = vmatpush1.msra.mxu0 %v1058
      %1204 = vmatprep.subr.mxu0 0.0
      %1205 = vmatpush1.msra.mxu0 %v1059
      %1206 = vmatprep.subr.mxu0 0.0
      %1207 = vmatpush1.msra.mxu0 %v1060
      %1208 = vmatprep.subr.mxu0 0.0
      %1209 = vmatpush1.msra.mxu0 %v1061
      %1210 = vmatprep.subr.mxu0 0.0
      %1211 = vmatpush1.msra.mxu0 %v1062
      %1212 = vmatprep.subr.mxu0 0.0
      %1213 = vmatpush1.msra.mxu0 %v1063
      %1214 = vmatprep.subr.mxu0 0.0
      %1215 = vmatpush1.msra.mxu0 %v1064
      %1216 = vmatprep.subr.mxu0 0.0
      %1217 = vmatpush1.msra.mxu0 %v1065
      %1218 = vmatprep.subr.mxu0 0.0
      %1219 = vmatpush1.msra.mxu0 %v1066
      %1220 = vmatprep.subr.mxu0 0.0
      %1221 = vmatpush1.msra.mxu0 %v1067
      %1222 = vmatprep.subr.mxu0 0.0
      %1223 = vmatpush1.msra.mxu0 %v1068
      %1224 = vmatprep.subr.mxu0 0.0
      %1225 = vmatpush1.msra.mxu0 %v1069
      %1226 = vmatprep.subr.mxu0 0.0
      %1227 = vmatpush1.msra.mxu0 %v1070
      %1228 = vmatprep.subr.mxu0 0.0
      %1229 = vmatpush1.msra.mxu0 %v1071
      %1230 = vmatprep.subr.mxu0 0.0
      %1231 = vmatpush1.msra.mxu0 %v1072
      %1232 = vmatprep.subr.mxu0 0.0
      %1233 = vmatpush1.msra.mxu0 %v1073
      %1234 = vmatprep.subr.mxu0 0.0
      %1235 = vmatpush1.msra.mxu0 %v1074
      %1236 = vmatprep.subr.mxu0 0.0
      %1237 = vmatpush1.msra.mxu0 %v1075
      %1238 = vmatprep.subr.mxu0 0.0
      %1239 = vmatpush1.msra.mxu0 %v1076
      %1240 = vmatprep.subr.mxu0 0.0
      %1241 = vmatpush1.msra.mxu0 %v1077
      %1242 = vmatprep.subr.mxu0 0.0
      %1243 = vmatpush1.msra.mxu0 %v1078
      %1244 = vmatprep.subr.mxu0 0.0
      %1245 = vmatpush1.msra.mxu0 %v1079
      %1246 = vmatprep.subr.mxu0 0.0
      %1247 = vmatpush1.msra.mxu0 %v1080
      %1248 = vmatprep.subr.mxu0 0.0
      %1249 = vmatpush1.msra.mxu0 %v1081
      %1250 = vmatprep.subr.mxu0 0.0
      %1251 = vmatpush1.msra.mxu0 %v1082
      %1252 = vmatprep.subr.mxu0 0.0
      %1253 = vmatpush1.msra.mxu0 %v1083
      %1254 = vmatprep.subr.mxu0 0.0
      %1255 = vmatpush1.msra.mxu0 %v1084
      %1256 = vmatprep.subr.mxu0 0.0
      %1257 = vmatpush1.msra.mxu0 %v1085
      %1258 = vmatprep.subr.mxu0 0.0
      %1259 = vmatpush1.msra.mxu0 %v1086
      %1260 = vmatprep.subr.mxu0 0.0
      %1261 = vmatpush1.msra.mxu0 %v1087
      %1262 = vmatprep.subr.mxu0 0.0
      %1263 = vmatpush1.msra.mxu0 %v1088
      %1264 = vmatprep.subr.mxu0 0.0
      %1265 = vmatpush1.msra.mxu0 %v1089
      %1266 = vmatprep.mubr.f32.mxu0 %v963
      %1267 = vmatmul.mubr.f32.gmra.mrb[0].mxu0 %v962
      %v1268 = vpop.f32.mrb[0].mxu0
      %v1269 = vadd.f32 %v1100, %v1268
      %v1270 = vpop.f32.mrb[0].mxu0
      %1271 = vmatprep.mubr.f32.mxu0 %v966
      %1272 = vmatmul.mubr.f32.gmra.mrb[0].mxu0 %v965
      %v1273 = vpop.f32.mrb[0].mxu0
      %v1274 = vadd.f32 %v1100, %v1273
      %v1275 = vpop.f32.mrb[0].mxu0
      %1276 = vmatprep.mubr.f32.mxu0 %v969
      %1277 = vmatmul.mubr.f32.gmra.mrb[0].mxu0 %v968
      %v1278 = vpop.f32.mrb[0].mxu0
      %v1279 = vadd.f32 %v1100, %v1278
      %v1280 = vpop.f32.mrb[0].mxu0
      %1281 = vmatprep.mubr.f32.mxu0 %v972
      %1282 = vmatmul.mubr.f32.gmra.mrb[0].mxu0 %v971
      %v1283 = vpop.f32.mrb[0].mxu0
      %v1284 = vadd.f32 %v1100, %v1283
      %v1285 = vpop.f32.mrb[0].mxu0
      %1286 = vmatprep.mubr.f32.mxu0 %v975
      %1287 = vmatmul.mubr.f32.gmra.mrb[0].mxu0 %v974
      %v1288 = vpop.f32.mrb[0].mxu0
      %v1289 = vadd.f32 %v1100, %v1288
      %v1290 = vpop.f32.mrb[0].mxu0
      %1291 = vmatprep.mubr.f32.mxu0 %v978
      %1292 = vmatmul.mubr.f32.gmra.mrb[0].mxu0 %v977
      %v1293 = vpop.f32.mrb[0].mxu0
      %v1294 = vadd.f32 %v1100, %v1293
      %v1295 = vpop.f32.mrb[0].mxu0
      %1296 = vmatprep.mubr.f32.mxu0 %v981
      %1297 = vmatmul.mubr.f32.gmra.mrb[0].mxu0 %v980
      %v1298 = vpop.f32.mrb[0].mxu0
      %v1299 = vadd.f32 %v1100, %v1298
      %v1300 = vpop.f32.mrb[0].mxu0
      %1301 = vmatprep.mubr.f32.mxu0 %v984
      %1302 = vmatmul.mubr.f32.gmra.mrb[0].mxu0 %v983
      %v1303 = vpop.f32.mrb[0].mxu0
      %v1304 = vadd.f32 %v1100, %v1303
      %v1305 = vpop.f32.mrb[0].mxu0
      %1306 = vmatprep.mubr.f32.mxu0 %v987
      %1307 = vmatmul.mubr.f32.gmra.mrb[0].mxu0 %v986
      %v1308 = vpop.f32.mrb[0].mxu0
      %v1309 = vadd.f32 %v1100, %v1308
      %v1310 = vpop.f32.mrb[0].mxu0
      %1311 = vmatprep.mubr.f32.mxu0 %v990
      %1312 = vmatmul.mubr.f32.gmra.mrb[0].mxu0 %v989
      %v1313 = vpop.f32.mrb[0].mxu0
      %v1314 = vadd.f32 %v1100, %v1313
      %v1315 = vpop.f32.mrb[0].mxu0
      %1316 = vmatprep.mubr.f32.mxu0 %v993
      %1317 = vmatmul.mubr.f32.gmra.mrb[0].mxu0 %v992
      %v1318 = vpop.f32.mrb[0].mxu0
      %v1319 = vadd.f32 %v1100, %v1318
      %v1320 = vpop.f32.mrb[0].mxu0
      %1321 = vmatprep.mubr.f32.mxu0 %v996
      %1322 = vmatmul.mubr.f32.gmra.mrb[0].mxu0 %v995
      %v1323 = vpop.f32.mrb[0].mxu0
      %v1324 = vadd.f32 %v1100, %v1323
      %v1325 = vpop.f32.mrb[0].mxu0
      %1326 = vmatprep.mubr.f32.mxu0 %v999
      %1327 = vmatmul.mubr.f32.gmra.mrb[0].mxu0 %v998
      %v1328 = vpop.f32.mrb[0].mxu0
      %v1329 = vadd.f32 %v1100, %v1328
      %v1330 = vpop.f32.mrb[0].mxu0
      %1331 = vmatprep.mubr.f32.mxu0 %v1002
      %1332 = vmatmul.mubr.f32.gmra.mrb[0].mxu0 %v1001
      %v1333 = vpop.f32.mrb[0].mxu0
      %v1334 = vadd.f32 %v1100, %v1333
      %v1335 = vpop.f32.mrb[0].mxu0
      %1336 = vmatprep.mubr.f32.mxu0 %v1005
      %1337 = vmatmul.mubr.f32.gmra.mrb[0].mxu0 %v1004
      %v1338 = vpop.f32.mrb[0].mxu0
      %v1339 = vadd.f32 %v1100, %v1338
      %v1340 = vpop.f32.mrb[0].mxu0
      %1341 = vmatprep.mubr.f32.mxu0 %v1008
      %1342 = vmatmul.mubr.f32.gmra.mrb[0].mxu0 %v1007
      %v1343 = vpop.f32.mrb[0].mxu0
      %v1344 = vadd.f32 %v1100, %v1343
      %v1345 = vpop.f32.mrb[0].mxu0
      %1346 = vmatprep.mubr.f32.mxu0 %v1011
      %1347 = vmatmul.mubr.f32.gmra.mrb[0].mxu0 %v1010
      %v1348 = vpop.f32.mrb[0].mxu0
      %v1349 = vadd.f32 %v1100, %v1348
      %v1350 = vpop.f32.mrb[0].mxu0
      %1351 = vmatprep.mubr.f32.mxu0 %v1014
      %1352 = vmatmul.mubr.f32.gmra.mrb[0].mxu0 %v1013
      %v1353 = vpop.f32.mrb[0].mxu0
      %v1354 = vadd.f32 %v1100, %v1353
      %v1355 = vpop.f32.mrb[0].mxu0
      %1356 = vmatprep.mubr.f32.mxu0 %v1017
      %1357 = vmatmul.mubr.f32.gmra.mrb[0].mxu0 %v1016
      %v1358 = vpop.f32.mrb[0].mxu0
      %v1359 = vadd.f32 %v1100, %v1358
      %v1360 = vpop.f32.mrb[0].mxu0
      %1361 = vmatprep.mubr.f32.mxu0 %v1020
      %1362 = vmatmul.mubr.f32.gmra.mrb[0].mxu0 %v1019
      %v1363 = vpop.f32.mrb[0].mxu0
      %v1364 = vadd.f32 %v1100, %v1363
      %v1365 = vpop.f32.mrb[0].mxu0
      %1366 = vmatprep.mubr.f32.mxu0 %v1023
      %1367 = vmatmul.mubr.f32.gmra.mrb[0].mxu0 %v1022
      %v1368 = vpop.f32.mrb[0].mxu0
      %v1369 = vadd.f32 %v1100, %v1368
      %v1370 = vpop.f32.mrb[0].mxu0
      %1371 = vmatprep.mubr.f32.mxu0 %v1026
      %1372 = vmatmul.mubr.f32.gmra.mrb[0].mxu0 %v1025
      %v1373 = vpop.f32.mrb[0].mxu0
      %v1374 = vadd.f32 %v1100, %v1373
      %v1375 = vpop.f32.mrb[0].mxu0
      %1376 = vmatprep.mubr.f32.mxu0 %v1029
      %1377 = vmatmul.mubr.f32.gmra.mrb[0].mxu0 %v1028
      %v1378 = vpop.f32.mrb[0].mxu0
      %v1379 = vadd.f32 %v1100, %v1378
      %v1380 = vpop.f32.mrb[0].mxu0
      %1381 = vmatprep.mubr.f32.mxu0 %v1032
      %1382 = vmatmul.mubr.f32.gmra.mrb[0].mxu0 %v1031
      %v1383 = vpop.f32.mrb[0].mxu0
      %v1384 = vadd.f32 %v1100, %v1383
      %v1385 = vpop.f32.mrb[0].mxu0
      %1386 = vmatprep.mubr.f32.mxu0 %v1035
      %1387 = vmatmul.mubr.f32.gmra.mrb[0].mxu0 %v1034
      %v1388 = vpop.f32.mrb[0].mxu0
      %v1389 = vadd.f32 %v1100, %v1388
      %v1390 = vpop.f32.mrb[0].mxu0
      %1391 = vmatprep.mubr.f32.mxu0 %v1038
      %1392 = vmatmul.mubr.f32.gmra.mrb[0].mxu0 %v1037
      %v1393 = vpop.f32.mrb[0].mxu0
      %v1394 = vadd.f32 %v1100, %v1393
      %v1395 = vpop.f32.mrb[0].mxu0
      %1396 = vmatprep.mubr.f32.mxu0 %v1041
      %1397 = vmatmul.mubr.f32.gmra.mrb[0].mxu0 %v1040
      %v1398 = vpop.f32.mrb[0].mxu0
      %v1399 = vadd.f32 %v1100, %v1398
      %v1400 = vpop.f32.mrb[0].mxu0
      %1401 = vmatprep.mubr.f32.mxu0 %v1044
      %1402 = vmatmul.mubr.f32.gmra.mrb[0].mxu0 %v1043
      %v1403 = vpop.f32.mrb[0].mxu0
      %v1404 = vadd.f32 %v1100, %v1403
      %v1405 = vpop.f32.mrb[0].mxu0
      %1406 = vmatprep.mubr.f32.mxu0 %v1047
      %1407 = vmatmul.mubr.f32.gmra.mrb[0].mxu0 %v1046
      %v1408 = vpop.f32.mrb[0].mxu0
      %v1409 = vadd.f32 %v1100, %v1408
      %v1410 = vpop.f32.mrb[0].mxu0
      %1411 = vmatprep.mubr.f32.mxu0 %v1050
      %1412 = vmatmul.mubr.f32.gmra.mrb[0].mxu0 %v1049
      %v1413 = vpop.f32.mrb[0].mxu0
      %v1414 = vadd.f32 %v1100, %v1413
      %v1415 = vpop.f32.mrb[0].mxu0
      %1416 = vmatprep.mubr.f32.mxu0 %v1053
      %1417 = vmatmul.mubr.f32.gmra.mrb[0].mxu0 %v1052
      %v1418 = vpop.f32.mrb[0].mxu0
      %v1419 = vadd.f32 %v1100, %v1418
      %v1420 = vpop.f32.mrb[0].mxu0
      %1421 = vmatprep.mubr.f32.mxu0 %v1056
      %1422 = vmatmul.mubr.f32.gmra.mrb[0].mxu0 %v1055
      %v1423 = vpop.f32.mrb[0].mxu0
      %v1424 = vadd.f32 %v1100, %v1423
      %v1425 = vpop.f32.mrb[0].mxu0
      %1426 = vdwg.mxu0
      %1427 = vmatprep.subr.mxu0 0.0
      %1428 = vmatpush1.msra.mxu0 %v1090
      %1429 = vmatprep.subr.mxu0 0.0
      %1430 = vmatpush1.msra.mxu0 %v1091
      %1431 = vmatprep.subr.mxu0 0.0
      %1432 = vmatpush1.msra.mxu0 %v1092
      %1433 = vmatprep.subr.mxu0 0.0
      %1434 = vmatpush1.msra.mxu0 %v1093
      %1435 = vmatprep.subr.mxu0 0.0
      %1436 = vmatpush1.msra.mxu0 %v1094
      %1437 = vmatprep.subr.mxu0 0.0
      %1438 = vmatpush1.msra.mxu0 %v1095
      %1439 = vmatprep.subr.mxu0 0.0
      %1440 = vmatpush1.msra.mxu0 %v1096
      %1441 = vmatprep.subr.mxu0 0.0
      %1442 = vmatpush1.msra.mxu0 %v1097
      %1443 = vmatprep.subr.mxu0 0.0
      %1444 = vmatpush1.msra.mxu0 %v1098
      %1445 = vmatprep.subr.mxu0 0.0
      %1446 = vmatpush1.msra.mxu0 %v1200
      %1447 = vmatprep.subr.mxu0 0.0
      %1448 = vmatpush1.msra.mxu0 0.0
      %1449 = vmatprep.subr.mxu0 0.0
      %1450 = vmatpush1.msra.mxu0 0.0
      %1451 = vmatprep.subr.mxu0 0.0
      %1452 = vmatpush1.msra.mxu0 0.0
      %1453 = vmatprep.subr.mxu0 0.0
      %1454 = vmatpush1.msra.mxu0 0.0
      %1455 = vmatprep.subr.mxu0 0.0
      %1456 = vmatpush1.msra.mxu0 0.0
      %1457 = vmatprep.subr.mxu0 0.0
      %1458 = vmatpush1.msra.mxu0 0.0
      %1459 = vmatprep.subr.mxu0 0.0
      %1460 = vmatpush1.msra.mxu0 0.0
      %1461 = vmatprep.subr.mxu0 0.0
      %1462 = vmatpush1.msra.mxu0 0.0
      %1463 = vmatprep.subr.mxu0 0.0
      %1464 = vmatpush1.msra.mxu0 0.0
      %1465 = vmatprep.subr.mxu0 0.0
      %1466 = vmatpush1.msra.mxu0 0.0
      %1467 = vmatprep.subr.mxu0 0.0
      %1468 = vmatpush1.msra.mxu0 0.0
      %1469 = vmatprep.subr.mxu0 0.0
      %1470 = vmatpush1.msra.mxu0 0.0
      %1471 = vmatprep.subr.mxu0 0.0
      %1472 = vmatpush1.msra.mxu0 0.0
      %1473 = vmatprep.subr.mxu0 0.0
      %1474 = vmatpush1.msra.mxu0 0.0
      %1475 = vmatprep.subr.mxu0 0.0
      %1476 = vmatpush1.msra.mxu0 0.0
      %1477 = vmatprep.subr.mxu0 0.0
      %1478 = vmatpush1.msra.mxu0 0.0
      %1479 = vmatprep.subr.mxu0 0.0
      %1480 = vmatpush1.msra.mxu0 0.0
      %1481 = vmatprep.subr.mxu0 0.0
      %1482 = vmatpush1.msra.mxu0 0.0
      %1483 = vmatprep.subr.mxu0 0.0
      %1484 = vmatpush1.msra.mxu0 0.0
      %1485 = vmatprep.subr.mxu0 0.0
      %1486 = vmatpush1.msra.mxu0 0.0
      %1487 = vmatprep.subr.mxu0 0.0
      %1488 = vmatpush1.msra.mxu0 0.0
      %1489 = vmatprep.subr.mxu0 0.0
      %1490 = vmatpush1.msra.mxu0 0.0
      %1491 = vmatprep.mubr.f32.mxu0 0.0
      %1492 = vmatmul.mubr.f32.gmra.mrb[0].mxu0 %v1103
      %v1493 = vpop.f32.mrb[0].mxu0
      %v1494 = vadd.f32 %v1269, %v1493
      %v1495 = vpop.f32.mrb[0].mxu0
      %1496 = vmatprep.mubr.f32.mxu0 0.0
      %1497 = vmatmul.mubr.f32.gmra.mrb[0].mxu0 %v1106
      %v1498 = vpop.f32.mrb[0].mxu0
      %v1499 = vadd.f32 %v1274, %v1498
      %v1500 = vpop.f32.mrb[0].mxu0
      %1501 = vmatprep.mubr.f32.mxu0 0.0
      %1502 = vmatmul.mubr.f32.gmra.mrb[0].mxu0 %v1109
      %v1503 = vpop.f32.mrb[0].mxu0
      %v1504 = vadd.f32 %v1279, %v1503
      %v1505 = vpop.f32.mrb[0].mxu0
      %1506 = vmatprep.mubr.f32.mxu0 0.0
      %1507 = vmatmul.mubr.f32.gmra.mrb[0].mxu0 %v1112
      %v1508 = vpop.f32.mrb[0].mxu0
      %v1509 = vadd.f32 %v1284, %v1508
      %v1510 = vpop.f32.mrb[0].mxu0
      %1511 = vmatprep.mubr.f32.mxu0 0.0
      %1512 = vmatmul.mubr.f32.gmra.mrb[0].mxu0 %v1115
      %v1513 = vpop.f32.mrb[0].mxu0
      %v1514 = vadd.f32 %v1289, %v1513
      %v1515 = vpop.f32.mrb[0].mxu0
      %1516 = vmatprep.mubr.f32.mxu0 0.0
      %1517 = vmatmul.mubr.f32.gmra.mrb[0].mxu0 %v1118
      %v1518 = vpop.f32.mrb[0].mxu0
      %v1519 = vadd.f32 %v1294, %v1518
      %v1520 = vpop.f32.mrb[0].mxu0
      %1521 = vmatprep.mubr.f32.mxu0 0.0
      %1522 = vmatmul.mubr.f32.gmra.mrb[0].mxu0 %v1121
      %v1523 = vpop.f32.mrb[0].mxu0
      %v1524 = vadd.f32 %v1299, %v1523
      %v1525 = vpop.f32.mrb[0].mxu0
      %1526 = vmatprep.mubr.f32.mxu0 0.0
      %1527 = vmatmul.mubr.f32.gmra.mrb[0].mxu0 %v1124
      %v1528 = vpop.f32.mrb[0].mxu0
      %v1529 = vadd.f32 %v1304, %v1528
      %v1530 = vpop.f32.mrb[0].mxu0
      %1531 = vmatprep.mubr.f32.mxu0 0.0
      %1532 = vmatmul.mubr.f32.gmra.mrb[0].mxu0 %v1127
      %v1533 = vpop.f32.mrb[0].mxu0
      %v1534 = vadd.f32 %v1309, %v1533
      %v1535 = vpop.f32.mrb[0].mxu0
      %1536 = vmatprep.mubr.f32.mxu0 0.0
      %1537 = vmatmul.mubr.f32.gmra.mrb[0].mxu0 %v1130
      %v1538 = vpop.f32.mrb[0].mxu0
      %v1539 = vadd.f32 %v1314, %v1538
      %v1540 = vpop.f32.mrb[0].mxu0
      %1541 = vmatprep.mubr.f32.mxu0 0.0
      %1542 = vmatmul.mubr.f32.gmra.mrb[0].mxu0 %v1133
      %v1543 = vpop.f32.mrb[0].mxu0
      %v1544 = vadd.f32 %v1319, %v1543
      %v1545 = vpop.f32.mrb[0].mxu0
      %1546 = vmatprep.mubr.f32.mxu0 0.0
      %1547 = vmatmul.mubr.f32.gmra.mrb[0].mxu0 %v1136
      %v1548 = vpop.f32.mrb[0].mxu0
      %v1549 = vadd.f32 %v1324, %v1548
      %v1550 = vpop.f32.mrb[0].mxu0
      %1551 = vmatprep.mubr.f32.mxu0 0.0
      %1552 = vmatmul.mubr.f32.gmra.mrb[0].mxu0 %v1139
      %v1553 = vpop.f32.mrb[0].mxu0
      %v1554 = vadd.f32 %v1329, %v1553
      %v1555 = vpop.f32.mrb[0].mxu0
      %1556 = vmatprep.mubr.f32.mxu0 0.0
      %1557 = vmatmul.mubr.f32.gmra.mrb[0].mxu0 %v1142
      %v1558 = vpop.f32.mrb[0].mxu0
      %v1559 = vadd.f32 %v1334, %v1558
      %v1560 = vpop.f32.mrb[0].mxu0
      %1561 = vmatprep.mubr.f32.mxu0 0.0
      %1562 = vmatmul.mubr.f32.gmra.mrb[0].mxu0 %v1145
      %v1563 = vpop.f32.mrb[0].mxu0
      %v1564 = vadd.f32 %v1339, %v1563
      %v1565 = vpop.f32.mrb[0].mxu0
      %1566 = vmatprep.mubr.f32.mxu0 0.0
      %1567 = vmatmul.mubr.f32.gmra.mrb[0].mxu0 %v1148
      %v1568 = vpop.f32.mrb[0].mxu0
      %v1569 = vadd.f32 %v1344, %v1568
      %v1570 = vpop.f32.mrb[0].mxu0
      %1571 = vmatprep.mubr.f32.mxu0 0.0
      %1572 = vmatmul.mubr.f32.gmra.mrb[0].mxu0 %v1151
      %v1573 = vpop.f32.mrb[0].mxu0
      %v1574 = vadd.f32 %v1349, %v1573
      %v1575 = vpop.f32.mrb[0].mxu0
      %1576 = vmatprep.mubr.f32.mxu0 0.0
      %1577 = vmatmul.mubr.f32.gmra.mrb[0].mxu0 %v1154
      %v1578 = vpop.f32.mrb[0].mxu0
      %v1579 = vadd.f32 %v1354, %v1578
      %v1580 = vpop.f32.mrb[0].mxu0
      %1581 = vmatprep.mubr.f32.mxu0 0.0
      %1582 = vmatmul.mubr.f32.gmra.mrb[0].mxu0 %v1157
      %v1583 = vpop.f32.mrb[0].mxu0
      %v1584 = vadd.f32 %v1359, %v1583
      %v1585 = vpop.f32.mrb[0].mxu0
      %1586 = vmatprep.mubr.f32.mxu0 0.0
      %1587 = vmatmul.mubr.f32.gmra.mrb[0].mxu0 %v1160
      %v1588 = vpop.f32.mrb[0].mxu0
      %v1589 = vadd.f32 %v1364, %v1588
      %v1590 = vpop.f32.mrb[0].mxu0
      %1591 = vmatprep.mubr.f32.mxu0 0.0
      %1592 = vmatmul.mubr.f32.gmra.mrb[0].mxu0 %v1163
      %v1593 = vpop.f32.mrb[0].mxu0
      %v1594 = vadd.f32 %v1369, %v1593
      %v1595 = vpop.f32.mrb[0].mxu0
      %1596 = vmatprep.mubr.f32.mxu0 0.0
      %1597 = vmatmul.mubr.f32.gmra.mrb[0].mxu0 %v1166
      %v1598 = vpop.f32.mrb[0].mxu0
      %v1599 = vadd.f32 %v1374, %v1598
      %v1600 = vpop.f32.mrb[0].mxu0
      %1601 = vmatprep.mubr.f32.mxu0 0.0
      %1602 = vmatmul.mubr.f32.gmra.mrb[0].mxu0 %v1169
      %v1603 = vpop.f32.mrb[0].mxu0
      %v1604 = vadd.f32 %v1379, %v1603
      %v1605 = vpop.f32.mrb[0].mxu0
      %1606 = vmatprep.mubr.f32.mxu0 0.0
      %1607 = vmatmul.mubr.f32.gmra.mrb[0].mxu0 %v1172
      %v1608 = vpop.f32.mrb[0].mxu0
      %v1609 = vadd.f32 %v1384, %v1608
      %v1610 = vpop.f32.mrb[0].mxu0
      %1611 = vmatprep.mubr.f32.mxu0 0.0
      %1612 = vmatmul.mubr.f32.gmra.mrb[0].mxu0 %v1175
      %v1613 = vpop.f32.mrb[0].mxu0
      %v1614 = vadd.f32 %v1389, %v1613
      %v1615 = vpop.f32.mrb[0].mxu0
      %1616 = vmatprep.mubr.f32.mxu0 0.0
      %1617 = vmatmul.mubr.f32.gmra.mrb[0].mxu0 %v1178
      %v1618 = vpop.f32.mrb[0].mxu0
      %v1619 = vadd.f32 %v1394, %v1618
      %v1620 = vpop.f32.mrb[0].mxu0
      %1621 = vmatprep.mubr.f32.mxu0 0.0
      %1622 = vmatmul.mubr.f32.gmra.mrb[0].mxu0 %v1181
      %v1623 = vpop.f32.mrb[0].mxu0
      %v1624 = vadd.f32 %v1399, %v1623
      %v1625 = vpop.f32.mrb[0].mxu0
      %1626 = vmatprep.mubr.f32.mxu0 0.0
      %1627 = vmatmul.mubr.f32.gmra.mrb[0].mxu0 %v1184
      %v1628 = vpop.f32.mrb[0].mxu0
      %v1629 = vadd.f32 %v1404, %v1628
      %v1630 = vpop.f32.mrb[0].mxu0
      %1631 = vmatprep.mubr.f32.mxu0 0.0
      %1632 = vmatmul.mubr.f32.gmra.mrb[0].mxu0 %v1187
      %v1633 = vpop.f32.mrb[0].mxu0
      %v1634 = vadd.f32 %v1409, %v1633
      %v1635 = vpop.f32.mrb[0].mxu0
      %1636 = vmatprep.mubr.f32.mxu0 0.0
      %1637 = vmatmul.mubr.f32.gmra.mrb[0].mxu0 %v1190
      %v1638 = vpop.f32.mrb[0].mxu0
      %v1639 = vadd.f32 %v1414, %v1638
      %v1640 = vpop.f32.mrb[0].mxu0
      %1641 = vmatprep.mubr.f32.mxu0 0.0
      %1642 = vmatmul.mubr.f32.gmra.mrb[0].mxu0 %v1193
      %v1643 = vpop.f32.mrb[0].mxu0
      %v1644 = vadd.f32 %v1419, %v1643
      %v1645 = vpop.f32.mrb[0].mxu0
      %1646 = vmatprep.mubr.f32.mxu0 0.0
      %1647 = vmatmul.mubr.f32.gmra.mrb[0].mxu0 %v1196
      %v1648 = vpop.f32.mrb[0].mxu0
      %v1649 = vadd.f32 %v1424, %v1648
      %v1650 = vpop.f32.mrb[0].mxu0
      %1651 = vdwg.mxu0
      %v1652 = vmax.f32 %v1494, 0.0
      %v1653 = vmax.f32 %v1499, 0.0
      %v1654 = vmax.f32 %v1504, 0.0
      %v1655 = vmax.f32 %v1509, 0.0
      %v1656 = vmax.f32 %v1514, 0.0
      %v1657 = vmax.f32 %v1519, 0.0
      %v1658 = vmax.f32 %v1524, 0.0
      %v1659 = vmax.f32 %v1529, 0.0
      %v1660 = vmax.f32 %v1534, 0.0
      %v1661 = vmax.f32 %v1539, 0.0
      %v1662 = vmax.f32 %v1544, 0.0
      %v1663 = vmax.f32 %v1549, 0.0
      %v1664 = vmax.f32 %v1554, 0.0
      %v1665 = vmax.f32 %v1559, 0.0
      %v1666 = vmax.f32 %v1564, 0.0
      %v1667 = vmax.f32 %v1569, 0.0
      %v1668 = vmax.f32 %v1574, 0.0
      %v1669 = vmax.f32 %v1579, 0.0
      %v1670 = vmax.f32 %v1584, 0.0
      %v1671 = vmax.f32 %v1589, 0.0
      %v1672 = vmax.f32 %v1594, 0.0
      %v1673 = vmax.f32 %v1599, 0.0
      %v1674 = vmax.f32 %v1604, 0.0
      %v1675 = vmax.f32 %v1609, 0.0
      %v1676 = vmax.f32 %v1614, 0.0
      %v1677 = vmax.f32 %v1619, 0.0
      %v1678 = vmax.f32 %v1624, 0.0
      %v1679 = vmax.f32 %v1629, 0.0
      %v1680 = vmax.f32 %v1634, 0.0
      %v1681 = vmax.f32 %v1639, 0.0
      %v1682 = vmax.f32 %v1644, 0.0
      %v1683 = vmax.f32 %v1649, 0.0
      %v1684 = vld [vmem:[%s3] sm:$0xff]
      %v1685 = vld [vmem:[%s3 + $0x8] sm:$0xff]
      %v1686 = vld [vmem:[%s3 + $0x10] sm:$0xff]
      %v1687 = vld [vmem:[%s3 + $0x18] sm:$0xff]
      %v1688 = vld [vmem:[%s3 + $0x20] sm:$0xff]
      %v1689 = vld [vmem:[%s3 + $0x28] sm:$0xff]
      %v1690 = vld [vmem:[%s3 + $0x30] sm:$0xff]
      %v1691 = vld [vmem:[%s3 + $0x38] sm:$0xff]
      %v1692 = vld [vmem:[%s3 + $0x40] sm:$0x3f]
      %v1693 = vld [vmem:[%s6 + $0x2] ss:$0 sm:$0xff]
      %vm1694 = vcmask 572416
      %v1696 = vsel %vm1694, %v1652, 0
      %v1699 = vsel %vm1694, %v1653, 0
      %v1702 = vsel %vm1694, %v1654, 0
      %v1705 = vsel %vm1694, %v1655, 0
      %v1708 = vsel %vm1694, %v1656, 0
      %v1711 = vsel %vm1694, %v1657, 0
      %v1714 = vsel %vm1694, %v1658, 0
      %v1717 = vsel %vm1694, %v1659, 0
      %v1720 = vsel %vm1694, %v1660, 0
      %v1723 = vsel %vm1694, %v1661, 0
      %v1726 = vsel %vm1694, %v1662, 0
      %v1729 = vsel %vm1694, %v1663, 0
      %v1732 = vsel %vm1694, %v1664, 0
      %v1735 = vsel %vm1694, %v1665, 0
      %v1738 = vsel %vm1694, %v1666, 0
      %v1741 = vsel %vm1694, %v1667, 0
      %v1744 = vsel %vm1694, %v1668, 0
      %v1747 = vsel %vm1694, %v1669, 0
      %v1750 = vsel %vm1694, %v1670, 0
      %v1753 = vsel %vm1694, %v1671, 0
      %v1756 = vsel %vm1694, %v1672, 0
      %v1759 = vsel %vm1694, %v1673, 0
      %v1762 = vsel %vm1694, %v1674, 0
      %v1765 = vsel %vm1694, %v1675, 0
      %v1768 = vsel %vm1694, %v1676, 0
      %v1771 = vsel %vm1694, %v1677, 0
      %v1774 = vsel %vm1694, %v1678, 0
      %v1777 = vsel %vm1694, %v1679, 0
      %v1780 = vsel %vm1694, %v1680, 0
      %v1783 = vsel %vm1694, %v1681, 0
      %v1786 = vsel %vm1694, %v1682, 0
      %v1789 = vsel %vm1694, %v1683, 0
      %vm1791 = vcmask 1045504
      %v1793 = vsel %vm1791, %v1692, 0
      %1795 = vmatprep.subr.mxu0 0.0
      %1796 = vmatpush1.msra.mxu0 %v1684
      %1797 = vmatprep.subr.mxu0 0.0
      %1798 = vmatpush1.msra.mxu0 %v1685
      %1799 = vmatprep.subr.mxu0 0.0
      %1800 = vmatpush1.msra.mxu0 %v1686
      %1801 = vmatprep.subr.mxu0 0.0
      %1802 = vmatpush1.msra.mxu0 %v1687
      %1803 = vmatprep.subr.mxu0 0.0
      %1804 = vmatpush1.msra.mxu0 %v1688
      %1805 = vmatprep.subr.mxu0 0.0
      %1806 = vmatpush1.msra.mxu0 %v1689
      %1807 = vmatprep.subr.mxu0 0.0
      %1808 = vmatpush1.msra.mxu0 %v1690
      %1809 = vmatprep.subr.mxu0 0.0
      %1810 = vmatpush1.msra.mxu0 %v1691
      %1811 = vmatprep.subr.mxu0 0.0
      %1812 = vmatpush1.msra.mxu0 %v1793
      %1813 = vmatprep.subr.mxu0 0.0
      %1814 = vmatpush1.msra.mxu0 0.0
      %1815 = vmatprep.subr.mxu0 0.0
      %1816 = vmatpush1.msra.mxu0 0.0
      %1817 = vmatprep.subr.mxu0 0.0
      %1818 = vmatpush1.msra.mxu0 0.0
      %1819 = vmatprep.subr.mxu0 0.0
      %1820 = vmatpush1.msra.mxu0 0.0
      %1821 = vmatprep.subr.mxu0 0.0
      %1822 = vmatpush1.msra.mxu0 0.0
      %1823 = vmatprep.subr.mxu0 0.0
      %1824 = vmatpush1.msra.mxu0 0.0
      %1825 = vmatprep.subr.mxu0 0.0
      %1826 = vmatpush1.msra.mxu0 0.0
      %1827 = vmatprep.subr.mxu0 0.0
      %1828 = vmatpush1.msra.mxu0 0.0
      %1829 = vmatprep.subr.mxu0 0.0
      %1830 = vmatpush1.msra.mxu0 0.0
      %1831 = vmatprep.subr.mxu0 0.0
      %1832 = vmatpush1.msra.mxu0 0.0
      %1833 = vmatprep.subr.mxu0 0.0
      %1834 = vmatpush1.msra.mxu0 0.0
      %1835 = vmatprep.subr.mxu0 0.0
      %1836 = vmatpush1.msra.mxu0 0.0
      %1837 = vmatprep.subr.mxu0 0.0
      %1838 = vmatpush1.msra.mxu0 0.0
      %1839 = vmatprep.subr.mxu0 0.0
      %1840 = vmatpush1.msra.mxu0 0.0
      %1841 = vmatprep.subr.mxu0 0.0
      %1842 = vmatpush1.msra.mxu0 0.0
      %1843 = vmatprep.subr.mxu0 0.0
      %1844 = vmatpush1.msra.mxu0 0.0
      %1845 = vmatprep.subr.mxu0 0.0
      %1846 = vmatpush1.msra.mxu0 0.0
      %1847 = vmatprep.subr.mxu0 0.0
      %1848 = vmatpush1.msra.mxu0 0.0
      %1849 = vmatprep.subr.mxu0 0.0
      %1850 = vmatpush1.msra.mxu0 0.0
      %1851 = vmatprep.subr.mxu0 0.0
      %1852 = vmatpush1.msra.mxu0 0.0
      %1853 = vmatprep.subr.mxu0 0.0
      %1854 = vmatpush1.msra.mxu0 0.0
      %1855 = vmatprep.subr.mxu0 0.0
      %1856 = vmatpush1.msra.mxu0 0.0
      %1857 = vmatprep.subr.mxu0 0.0
      %1858 = vmatpush1.msra.mxu0 0.0
      %1859 = vmatprep.mubr.f32.mxu0 0.0
      %1860 = vmatmul.mubr.f32.gmra.mrb[0].mxu0 %v1696
      %v1861 = vpop.f32.mrb[0].mxu0
      %v1862 = vadd.f32 %v1693, %v1861
      %v1863 = vpop.f32.mrb[0].mxu0
      %1864 = vmatprep.mubr.f32.mxu0 0.0
      %1865 = vmatmul.mubr.f32.gmra.mrb[0].mxu0 %v1699
      %v1866 = vpop.f32.mrb[0].mxu0
      %v1867 = vadd.f32 %v1693, %v1866
      %v1868 = vpop.f32.mrb[0].mxu0
      %1869 = vmatprep.mubr.f32.mxu0 0.0
      %1870 = vmatmul.mubr.f32.gmra.mrb[0].mxu0 %v1702
      %v1871 = vpop.f32.mrb[0].mxu0
      %v1872 = vadd.f32 %v1693, %v1871
      %v1873 = vpop.f32.mrb[0].mxu0
      %1874 = vmatprep.mubr.f32.mxu0 0.0
      %1875 = vmatmul.mubr.f32.gmra.mrb[0].mxu0 %v1705
      %v1876 = vpop.f32.mrb[0].mxu0
      %v1877 = vadd.f32 %v1693, %v1876
      %v1878 = vpop.f32.mrb[0].mxu0
      %1879 = vmatprep.mubr.f32.mxu0 0.0
      %1880 = vmatmul.mubr.f32.gmra.mrb[0].mxu0 %v1708
      %v1881 = vpop.f32.mrb[0].mxu0
      %v1882 = vadd.f32 %v1693, %v1881
      %v1883 = vpop.f32.mrb[0].mxu0
      %1884 = vmatprep.mubr.f32.mxu0 0.0
      %1885 = vmatmul.mubr.f32.gmra.mrb[0].mxu0 %v1711
      %v1886 = vpop.f32.mrb[0].mxu0
      %v1887 = vadd.f32 %v1693, %v1886
      %v1888 = vpop.f32.mrb[0].mxu0
      %1889 = vmatprep.mubr.f32.mxu0 0.0
      %1890 = vmatmul.mubr.f32.gmra.mrb[0].mxu0 %v1714
      %v1891 = vpop.f32.mrb[0].mxu0
      %v1892 = vadd.f32 %v1693, %v1891
      %v1893 = vpop.f32.mrb[0].mxu0
      %1894 = vmatprep.mubr.f32.mxu0 0.0
      %1895 = vmatmul.mubr.f32.gmra.mrb[0].mxu0 %v1717
      %v1896 = vpop.f32.mrb[0].mxu0
      %v1897 = vadd.f32 %v1693, %v1896
      %v1898 = vpop.f32.mrb[0].mxu0
      %1899 = vmatprep.mubr.f32.mxu0 0.0
      %1900 = vmatmul.mubr.f32.gmra.mrb[0].mxu0 %v1720
      %v1901 = vpop.f32.mrb[0].mxu0
      %v1902 = vadd.f32 %v1693, %v1901
      %v1903 = vpop.f32.mrb[0].mxu0
      %1904 = vmatprep.mubr.f32.mxu0 0.0
      %1905 = vmatmul.mubr.f32.gmra.mrb[0].mxu0 %v1723
      %v1906 = vpop.f32.mrb[0].mxu0
      %v1907 = vadd.f32 %v1693, %v1906
      %v1908 = vpop.f32.mrb[0].mxu0
      %1909 = vmatprep.mubr.f32.mxu0 0.0
      %1910 = vmatmul.mubr.f32.gmra.mrb[0].mxu0 %v1726
      %v1911 = vpop.f32.mrb[0].mxu0
      %v1912 = vadd.f32 %v1693, %v1911
      %v1913 = vpop.f32.mrb[0].mxu0
      %1914 = vmatprep.mubr.f32.mxu0 0.0
      %1915 = vmatmul.mubr.f32.gmra.mrb[0].mxu0 %v1729
      %v1916 = vpop.f32.mrb[0].mxu0
      %v1917 = vadd.f32 %v1693, %v1916
      %v1918 = vpop.f32.mrb[0].mxu0
      %1919 = vmatprep.mubr.f32.mxu0 0.0
      %1920 = vmatmul.mubr.f32.gmra.mrb[0].mxu0 %v1732
      %v1921 = vpop.f32.mrb[0].mxu0
      %v1922 = vadd.f32 %v1693, %v1921
      %v1923 = vpop.f32.mrb[0].mxu0
      %1924 = vmatprep.mubr.f32.mxu0 0.0
      %1925 = vmatmul.mubr.f32.gmra.mrb[0].mxu0 %v1735
      %v1926 = vpop.f32.mrb[0].mxu0
      %v1927 = vadd.f32 %v1693, %v1926
      %v1928 = vpop.f32.mrb[0].mxu0
      %1929 = vmatprep.mubr.f32.mxu0 0.0
      %1930 = vmatmul.mubr.f32.gmra.mrb[0].mxu0 %v1738
      %v1931 = vpop.f32.mrb[0].mxu0
      %v1932 = vadd.f32 %v1693, %v1931
      %v1933 = vpop.f32.mrb[0].mxu0
      %1934 = vmatprep.mubr.f32.mxu0 0.0
      %1935 = vmatmul.mubr.f32.gmra.mrb[0].mxu0 %v1741
      %v1936 = vpop.f32.mrb[0].mxu0
      %v1937 = vadd.f32 %v1693, %v1936
      %v1938 = vpop.f32.mrb[0].mxu0
      %1939 = vmatprep.mubr.f32.mxu0 0.0
      %1940 = vmatmul.mubr.f32.gmra.mrb[0].mxu0 %v1744
      %v1941 = vpop.f32.mrb[0].mxu0
      %v1942 = vadd.f32 %v1693, %v1941
      %v1943 = vpop.f32.mrb[0].mxu0
      %1944 = vmatprep.mubr.f32.mxu0 0.0
      %1945 = vmatmul.mubr.f32.gmra.mrb[0].mxu0 %v1747
      %v1946 = vpop.f32.mrb[0].mxu0
      %v1947 = vadd.f32 %v1693, %v1946
      %v1948 = vpop.f32.mrb[0].mxu0
      %1949 = vmatprep.mubr.f32.mxu0 0.0
      %1950 = vmatmul.mubr.f32.gmra.mrb[0].mxu0 %v1750
      %v1951 = vpop.f32.mrb[0].mxu0
      %v1952 = vadd.f32 %v1693, %v1951
      %v1953 = vpop.f32.mrb[0].mxu0
      %1954 = vmatprep.mubr.f32.mxu0 0.0
      %1955 = vmatmul.mubr.f32.gmra.mrb[0].mxu0 %v1753
      %v1956 = vpop.f32.mrb[0].mxu0
      %v1957 = vadd.f32 %v1693, %v1956
      %v1958 = vpop.f32.mrb[0].mxu0
      %1959 = vmatprep.mubr.f32.mxu0 0.0
      %1960 = vmatmul.mubr.f32.gmra.mrb[0].mxu0 %v1756
      %v1961 = vpop.f32.mrb[0].mxu0
      %v1962 = vadd.f32 %v1693, %v1961
      %v1963 = vpop.f32.mrb[0].mxu0
      %1964 = vmatprep.mubr.f32.mxu0 0.0
      %1965 = vmatmul.mubr.f32.gmra.mrb[0].mxu0 %v1759
      %v1966 = vpop.f32.mrb[0].mxu0
      %v1967 = vadd.f32 %v1693, %v1966
      %v1968 = vpop.f32.mrb[0].mxu0
      %1969 = vmatprep.mubr.f32.mxu0 0.0
      %1970 = vmatmul.mubr.f32.gmra.mrb[0].mxu0 %v1762
      %v1971 = vpop.f32.mrb[0].mxu0
      %v1972 = vadd.f32 %v1693, %v1971
      %v1973 = vpop.f32.mrb[0].mxu0
      %1974 = vmatprep.mubr.f32.mxu0 0.0
      %1975 = vmatmul.mubr.f32.gmra.mrb[0].mxu0 %v1765
      %v1976 = vpop.f32.mrb[0].mxu0
      %v1977 = vadd.f32 %v1693, %v1976
      %v1978 = vpop.f32.mrb[0].mxu0
      %1979 = vmatprep.mubr.f32.mxu0 0.0
      %1980 = vmatmul.mubr.f32.gmra.mrb[0].mxu0 %v1768
      %v1981 = vpop.f32.mrb[0].mxu0
      %v1982 = vadd.f32 %v1693, %v1981
      %v1983 = vpop.f32.mrb[0].mxu0
      %1984 = vmatprep.mubr.f32.mxu0 0.0
      %1985 = vmatmul.mubr.f32.gmra.mrb[0].mxu0 %v1771
      %v1986 = vpop.f32.mrb[0].mxu0
      %v1987 = vadd.f32 %v1693, %v1986
      %v1988 = vpop.f32.mrb[0].mxu0
      %1989 = vmatprep.mubr.f32.mxu0 0.0
      %1990 = vmatmul.mubr.f32.gmra.mrb[0].mxu0 %v1774
      %v1991 = vpop.f32.mrb[0].mxu0
      %v1992 = vadd.f32 %v1693, %v1991
      %v1993 = vpop.f32.mrb[0].mxu0
      %1994 = vmatprep.mubr.f32.mxu0 0.0
      %1995 = vmatmul.mubr.f32.gmra.mrb[0].mxu0 %v1777
      %v1996 = vpop.f32.mrb[0].mxu0
      %v1997 = vadd.f32 %v1693, %v1996
      %v1998 = vpop.f32.mrb[0].mxu0
      %1999 = vmatprep.mubr.f32.mxu0 0.0
      %2000 = vmatmul.mubr.f32.gmra.mrb[0].mxu0 %v1780
      %v2001 = vpop.f32.mrb[0].mxu0
      %v2002 = vadd.f32 %v1693, %v2001
      %v2003 = vpop.f32.mrb[0].mxu0
      %2004 = vmatprep.mubr.f32.mxu0 0.0
      %2005 = vmatmul.mubr.f32.gmra.mrb[0].mxu0 %v1783
      %v2006 = vpop.f32.mrb[0].mxu0
      %v2007 = vadd.f32 %v1693, %v2006
      %v2008 = vpop.f32.mrb[0].mxu0
      %2009 = vmatprep.mubr.f32.mxu0 0.0
      %2010 = vmatmul.mubr.f32.gmra.mrb[0].mxu0 %v1786
      %v2011 = vpop.f32.mrb[0].mxu0
      %v2012 = vadd.f32 %v1693, %v2011
      %v2013 = vpop.f32.mrb[0].mxu0
      %2014 = vmatprep.mubr.f32.mxu0 0.0
      %2015 = vmatmul.mubr.f32.gmra.mrb[0].mxu0 %v1789
      %v2016 = vpop.f32.mrb[0].mxu0
      %v2017 = vadd.f32 %v1693, %v2016
      %v2018 = vpop.f32.mrb[0].mxu0
      %2019 = vdwg.mxu0
      %v2020 = vmax.f32 %v1862, 0.0
      %v2021 = vmax.f32 %v1867, 0.0
      %v2022 = vmax.f32 %v1872, 0.0
      %v2023 = vmax.f32 %v1877, 0.0
      %v2024 = vmax.f32 %v1882, 0.0
      %v2025 = vmax.f32 %v1887, 0.0
      %v2026 = vmax.f32 %v1892, 0.0
      %v2027 = vmax.f32 %v1897, 0.0
      %v2028 = vmax.f32 %v1902, 0.0
      %v2029 = vmax.f32 %v1907, 0.0
      %v2030 = vmax.f32 %v1912, 0.0
      %v2031 = vmax.f32 %v1917, 0.0
      %v2032 = vmax.f32 %v1922, 0.0
      %v2033 = vmax.f32 %v1927, 0.0
      %v2034 = vmax.f32 %v1932, 0.0
      %v2035 = vmax.f32 %v1937, 0.0
      %v2036 = vmax.f32 %v1942, 0.0
      %v2037 = vmax.f32 %v1947, 0.0
      %v2038 = vmax.f32 %v1952, 0.0
      %v2039 = vmax.f32 %v1957, 0.0
      %v2040 = vmax.f32 %v1962, 0.0
      %v2041 = vmax.f32 %v1967, 0.0
      %v2042 = vmax.f32 %v1972, 0.0
      %v2043 = vmax.f32 %v1977, 0.0
      %v2044 = vmax.f32 %v1982, 0.0
      %v2045 = vmax.f32 %v1987, 0.0
      %v2046 = vmax.f32 %v1992, 0.0
      %v2047 = vmax.f32 %v1997, 0.0
      %v2048 = vmax.f32 %v2002, 0.0
      %v2049 = vmax.f32 %v2007, 0.0
      %v2050 = vmax.f32 %v2012, 0.0
      %v2051 = vmax.f32 %v2017, 0.0
      %v2052 = vld [vmem:[%s4] sm:$0xff]
      %v2053 = vld [vmem:[%s4 + $0x8] sm:$0xff]
      %v2054 = vld [vmem:[%s4 + $0x10] sm:$0xff]
      %v2055 = vld [vmem:[%s4 + $0x18] sm:$0x1]
      %v2056 = vld [vmem:[%s6 + $0x3] ss:$0 sm:$0xff]
      %vm2057 = vcmask 203776
      %v2059 = vsel %vm2057, %v2020, 0
      %v2062 = vsel %vm2057, %v2021, 0
      %v2065 = vsel %vm2057, %v2022, 0
      %v2068 = vsel %vm2057, %v2023, 0
      %v2071 = vsel %vm2057, %v2024, 0
      %v2074 = vsel %vm2057, %v2025, 0
      %v2077 = vsel %vm2057, %v2026, 0
      %v2080 = vsel %vm2057, %v2027, 0
      %v2083 = vsel %vm2057, %v2028, 0
      %v2086 = vsel %vm2057, %v2029, 0
      %v2089 = vsel %vm2057, %v2030, 0
      %v2092 = vsel %vm2057, %v2031, 0
      %v2095 = vsel %vm2057, %v2032, 0
      %v2098 = vsel %vm2057, %v2033, 0
      %v2101 = vsel %vm2057, %v2034, 0
      %v2104 = vsel %vm2057, %v2035, 0
      %v2107 = vsel %vm2057, %v2036, 0
      %v2110 = vsel %vm2057, %v2037, 0
      %v2113 = vsel %vm2057, %v2038, 0
      %v2116 = vsel %vm2057, %v2039, 0
      %v2119 = vsel %vm2057, %v2040, 0
      %v2122 = vsel %vm2057, %v2041, 0
      %v2125 = vsel %vm2057, %v2042, 0
      %v2128 = vsel %vm2057, %v2043, 0
      %v2131 = vsel %vm2057, %v2044, 0
      %v2134 = vsel %vm2057, %v2045, 0
      %v2137 = vsel %vm2057, %v2046, 0
      %v2140 = vsel %vm2057, %v2047, 0
      %v2143 = vsel %vm2057, %v2048, 0
      %v2146 = vsel %vm2057, %v2049, 0
      %v2149 = vsel %vm2057, %v2050, 0
      %v2152 = vsel %vm2057, %v2051, 0
      %v2155 = vsel %vm470, %v2055, 0
      %2157 = vmatprep.subr.mxu0 0.0
      %2158 = vmatpush1.msra.mxu0 %v2052
      %2159 = vmatprep.subr.mxu0 0.0
      %2160 = vmatpush1.msra.mxu0 %v2053
      %2161 = vmatprep.subr.mxu0 0.0
      %2162 = vmatpush1.msra.mxu0 %v2054
      %2163 = vmatprep.subr.mxu0 0.0
      %2164 = vmatpush1.msra.mxu0 %v2155
      %2165 = vmatprep.subr.mxu0 0.0
      %2166 = vmatpush1.msra.mxu0 0.0
      %2167 = vmatprep.subr.mxu0 0.0
      %2168 = vmatpush1.msra.mxu0 0.0
      %2169 = vmatprep.subr.mxu0 0.0
      %2170 = vmatpush1.msra.mxu0 0.0
      %2171 = vmatprep.subr.mxu0 0.0
      %2172 = vmatpush1.msra.mxu0 0.0
      %2173 = vmatprep.subr.mxu0 0.0
      %2174 = vmatpush1.msra.mxu0 0.0
      %2175 = vmatprep.subr.mxu0 0.0
      %2176 = vmatpush1.msra.mxu0 0.0
      %2177 = vmatprep.subr.mxu0 0.0
      %2178 = vmatpush1.msra.mxu0 0.0
      %2179 = vmatprep.subr.mxu0 0.0
      %2180 = vmatpush1.msra.mxu0 0.0
      %2181 = vmatprep.subr.mxu0 0.0
      %2182 = vmatpush1.msra.mxu0 0.0
      %2183 = vmatprep.subr.mxu0 0.0
      %2184 = vmatpush1.msra.mxu0 0.0
      %2185 = vmatprep.subr.mxu0 0.0
      %2186 = vmatpush1.msra.mxu0 0.0
      %2187 = vmatprep.subr.mxu0 0.0
      %2188 = vmatpush1.msra.mxu0 0.0
      %2189 = vmatprep.subr.mxu0 0.0
      %2190 = vmatpush1.msra.mxu0 0.0
      %2191 = vmatprep.subr.mxu0 0.0
      %2192 = vmatpush1.msra.mxu0 0.0
      %2193 = vmatprep.subr.mxu0 0.0
      %2194 = vmatpush1.msra.mxu0 0.0
      %2195 = vmatprep.subr.mxu0 0.0
      %2196 = vmatpush1.msra.mxu0 0.0
      %2197 = vmatprep.subr.mxu0 0.0
      %2198 = vmatpush1.msra.mxu0 0.0
      %2199 = vmatprep.subr.mxu0 0.0
      %2200 = vmatpush1.msra.mxu0 0.0
      %2201 = vmatprep.subr.mxu0 0.0
      %2202 = vmatpush1.msra.mxu0 0.0
      %2203 = vmatprep.subr.mxu0 0.0
      %2204 = vmatpush1.msra.mxu0 0.0
      %2205 = vmatprep.subr.mxu0 0.0
      %2206 = vmatpush1.msra.mxu0 0.0
      %2207 = vmatprep.subr.mxu0 0.0
      %2208 = vmatpush1.msra.mxu0 0.0
      %2209 = vmatprep.subr.mxu0 0.0
      %2210 = vmatpush1.msra.mxu0 0.0
      %2211 = vmatprep.subr.mxu0 0.0
      %2212 = vmatpush1.msra.mxu0 0.0
      %2213 = vmatprep.subr.mxu0 0.0
      %2214 = vmatpush1.msra.mxu0 0.0
      %2215 = vmatprep.subr.mxu0 0.0
      %2216 = vmatpush1.msra.mxu0 0.0
      %2217 = vmatprep.subr.mxu0 0.0
      %2218 = vmatpush1.msra.mxu0 0.0
      %2219 = vmatprep.subr.mxu0 0.0
      %2220 = vmatpush1.msra.mxu0 0.0
      %2221 = vmatprep.mubr.f32.mxu0 0.0
      %2222 = vmatmul.mubr.f32.gmra.mrb[0].mxu0 %v2059
      %v2223 = vpop.f32.mrb[0].mxu0
      %v2224 = vadd.f32 %v2056, %v2223
      %v2225 = vpop.f32.mrb[0].mxu0
      %2226 = vmatprep.mubr.f32.mxu0 0.0
      %2227 = vmatmul.mubr.f32.gmra.mrb[0].mxu0 %v2062
      %v2228 = vpop.f32.mrb[0].mxu0
      %v2229 = vadd.f32 %v2056, %v2228
      %v2230 = vpop.f32.mrb[0].mxu0
      %2231 = vmatprep.mubr.f32.mxu0 0.0
      %2232 = vmatmul.mubr.f32.gmra.mrb[0].mxu0 %v2065
      %v2233 = vpop.f32.mrb[0].mxu0
      %v2234 = vadd.f32 %v2056, %v2233
      %v2235 = vpop.f32.mrb[0].mxu0
      %2236 = vmatprep.mubr.f32.mxu0 0.0
      %2237 = vmatmul.mubr.f32.gmra.mrb[0].mxu0 %v2068
      %v2238 = vpop.f32.mrb[0].mxu0
      %v2239 = vadd.f32 %v2056, %v2238
      %v2240 = vpop.f32.mrb[0].mxu0
      %2241 = vmatprep.mubr.f32.mxu0 0.0
      %2242 = vmatmul.mubr.f32.gmra.mrb[0].mxu0 %v2071
      %v2243 = vpop.f32.mrb[0].mxu0
      %v2244 = vadd.f32 %v2056, %v2243
      %v2245 = vpop.f32.mrb[0].mxu0
      %2246 = vmatprep.mubr.f32.mxu0 0.0
      %2247 = vmatmul.mubr.f32.gmra.mrb[0].mxu0 %v2074
      %v2248 = vpop.f32.mrb[0].mxu0
      %v2249 = vadd.f32 %v2056, %v2248
      %v2250 = vpop.f32.mrb[0].mxu0
      %2251 = vmatprep.mubr.f32.mxu0 0.0
      %2252 = vmatmul.mubr.f32.gmra.mrb[0].mxu0 %v2077
      %v2253 = vpop.f32.mrb[0].mxu0
      %v2254 = vadd.f32 %v2056, %v2253
      %v2255 = vpop.f32.mrb[0].mxu0
      %2256 = vmatprep.mubr.f32.mxu0 0.0
      %2257 = vmatmul.mubr.f32.gmra.mrb[0].mxu0 %v2080
      %v2258 = vpop.f32.mrb[0].mxu0
      %v2259 = vadd.f32 %v2056, %v2258
      %v2260 = vpop.f32.mrb[0].mxu0
      %2261 = vmatprep.mubr.f32.mxu0 0.0
      %2262 = vmatmul.mubr.f32.gmra.mrb[0].mxu0 %v2083
      %v2263 = vpop.f32.mrb[0].mxu0
      %v2264 = vadd.f32 %v2056, %v2263
      %v2265 = vpop.f32.mrb[0].mxu0
      %2266 = vmatprep.mubr.f32.mxu0 0.0
      %2267 = vmatmul.mubr.f32.gmra.mrb[0].mxu0 %v2086
      %v2268 = vpop.f32.mrb[0].mxu0
      %v2269 = vadd.f32 %v2056, %v2268
      %v2270 = vpop.f32.mrb[0].mxu0
      %2271 = vmatprep.mubr.f32.mxu0 0.0
      %2272 = vmatmul.mubr.f32.gmra.mrb[0].mxu0 %v2089
      %v2273 = vpop.f32.mrb[0].mxu0
      %v2274 = vadd.f32 %v2056, %v2273
      %v2275 = vpop.f32.mrb[0].mxu0
      %2276 = vmatprep.mubr.f32.mxu0 0.0
      %2277 = vmatmul.mubr.f32.gmra.mrb[0].mxu0 %v2092
      %v2278 = vpop.f32.mrb[0].mxu0
      %v2279 = vadd.f32 %v2056, %v2278
      %v2280 = vpop.f32.mrb[0].mxu0
      %2281 = vmatprep.mubr.f32.mxu0 0.0
      %2282 = vmatmul.mubr.f32.gmra.mrb[0].mxu0 %v2095
      %v2283 = vpop.f32.mrb[0].mxu0
      %v2284 = vadd.f32 %v2056, %v2283
      %v2285 = vpop.f32.mrb[0].mxu0
      %2286 = vmatprep.mubr.f32.mxu0 0.0
      %2287 = vmatmul.mubr.f32.gmra.mrb[0].mxu0 %v2098
      %v2288 = vpop.f32.mrb[0].mxu0
      %v2289 = vadd.f32 %v2056, %v2288
      %v2290 = vpop.f32.mrb[0].mxu0
      %2291 = vmatprep.mubr.f32.mxu0 0.0
      %2292 = vmatmul.mubr.f32.gmra.mrb[0].mxu0 %v2101
      %v2293 = vpop.f32.mrb[0].mxu0
      %v2294 = vadd.f32 %v2056, %v2293
      %v2295 = vpop.f32.mrb[0].mxu0
      %2296 = vmatprep.mubr.f32.mxu0 0.0
      %2297 = vmatmul.mubr.f32.gmra.mrb[0].mxu0 %v2104
      %v2298 = vpop.f32.mrb[0].mxu0
      %v2299 = vadd.f32 %v2056, %v2298
      %v2300 = vpop.f32.mrb[0].mxu0
      %2301 = vmatprep.mubr.f32.mxu0 0.0
      %2302 = vmatmul.mubr.f32.gmra.mrb[0].mxu0 %v2107
      %v2303 = vpop.f32.mrb[0].mxu0
      %v2304 = vadd.f32 %v2056, %v2303
      %v2305 = vpop.f32.mrb[0].mxu0
      %2306 = vmatprep.mubr.f32.mxu0 0.0
      %2307 = vmatmul.mubr.f32.gmra.mrb[0].mxu0 %v2110
      %v2308 = vpop.f32.mrb[0].mxu0
      %v2309 = vadd.f32 %v2056, %v2308
      %v2310 = vpop.f32.mrb[0].mxu0
      %2311 = vmatprep.mubr.f32.mxu0 0.0
      %2312 = vmatmul.mubr.f32.gmra.mrb[0].mxu0 %v2113
      %v2313 = vpop.f32.mrb[0].mxu0
      %v2314 = vadd.f32 %v2056, %v2313
      %v2315 = vpop.f32.mrb[0].mxu0
      %2316 = vmatprep.mubr.f32.mxu0 0.0
      %2317 = vmatmul.mubr.f32.gmra.mrb[0].mxu0 %v2116
      %v2318 = vpop.f32.mrb[0].mxu0
      %v2319 = vadd.f32 %v2056, %v2318
      %v2320 = vpop.f32.mrb[0].mxu0
      %2321 = vmatprep.mubr.f32.mxu0 0.0
      %2322 = vmatmul.mubr.f32.gmra.mrb[0].mxu0 %v2119
      %v2323 = vpop.f32.mrb[0].mxu0
      %v2324 = vadd.f32 %v2056, %v2323
      %v2325 = vpop.f32.mrb[0].mxu0
      %2326 = vmatprep.mubr.f32.mxu0 0.0
      %2327 = vmatmul.mubr.f32.gmra.mrb[0].mxu0 %v2122
      %v2328 = vpop.f32.mrb[0].mxu0
      %v2329 = vadd.f32 %v2056, %v2328
      %v2330 = vpop.f32.mrb[0].mxu0
      %2331 = vmatprep.mubr.f32.mxu0 0.0
      %2332 = vmatmul.mubr.f32.gmra.mrb[0].mxu0 %v2125
      %v2333 = vpop.f32.mrb[0].mxu0
      %v2334 = vadd.f32 %v2056, %v2333
      %v2335 = vpop.f32.mrb[0].mxu0
      %2336 = vmatprep.mubr.f32.mxu0 0.0
      %2337 = vmatmul.mubr.f32.gmra.mrb[0].mxu0 %v2128
      %v2338 = vpop.f32.mrb[0].mxu0
      %v2339 = vadd.f32 %v2056, %v2338
      %v2340 = vpop.f32.mrb[0].mxu0
      %2341 = vmatprep.mubr.f32.mxu0 0.0
      %2342 = vmatmul.mubr.f32.gmra.mrb[0].mxu0 %v2131
      %v2343 = vpop.f32.mrb[0].mxu0
      %v2344 = vadd.f32 %v2056, %v2343
      %v2345 = vpop.f32.mrb[0].mxu0
      %2346 = vmatprep.mubr.f32.mxu0 0.0
      %2347 = vmatmul.mubr.f32.gmra.mrb[0].mxu0 %v2134
      %v2348 = vpop.f32.mrb[0].mxu0
      %v2349 = vadd.f32 %v2056, %v2348
      %v2350 = vpop.f32.mrb[0].mxu0
      %2351 = vmatprep.mubr.f32.mxu0 0.0
      %2352 = vmatmul.mubr.f32.gmra.mrb[0].mxu0 %v2137
      %v2353 = vpop.f32.mrb[0].mxu0
      %v2354 = vadd.f32 %v2056, %v2353
      %v2355 = vpop.f32.mrb[0].mxu0
      %2356 = vmatprep.mubr.f32.mxu0 0.0
      %2357 = vmatmul.mubr.f32.gmra.mrb[0].mxu0 %v2140
      %v2358 = vpop.f32.mrb[0].mxu0
      %v2359 = vadd.f32 %v2056, %v2358
      %v2360 = vpop.f32.mrb[0].mxu0
      %2361 = vmatprep.mubr.f32.mxu0 0.0
      %2362 = vmatmul.mubr.f32.gmra.mrb[0].mxu0 %v2143
      %v2363 = vpop.f32.mrb[0].mxu0
      %v2364 = vadd.f32 %v2056, %v2363
      %v2365 = vpop.f32.mrb[0].mxu0
      %2366 = vmatprep.mubr.f32.mxu0 0.0
      %2367 = vmatmul.mubr.f32.gmra.mrb[0].mxu0 %v2146
      %v2368 = vpop.f32.mrb[0].mxu0
      %v2369 = vadd.f32 %v2056, %v2368
      %v2370 = vpop.f32.mrb[0].mxu0
      %2371 = vmatprep.mubr.f32.mxu0 0.0
      %2372 = vmatmul.mubr.f32.gmra.mrb[0].mxu0 %v2149
      %v2373 = vpop.f32.mrb[0].mxu0
      %v2374 = vadd.f32 %v2056, %v2373
      %v2375 = vpop.f32.mrb[0].mxu0
      %2376 = vmatprep.mubr.f32.mxu0 0.0
      %2377 = vmatmul.mubr.f32.gmra.mrb[0].mxu0 %v2152
      %v2378 = vpop.f32.mrb[0].mxu0
      %v2379 = vadd.f32 %v2056, %v2378
      %v2380 = vpop.f32.mrb[0].mxu0
      %2381 = vdwg.mxu0
      %v2382 = vmax.f32 %v2224, 0.0
      %v2383 = vmax.f32 %v2229, 0.0
      %v2384 = vmax.f32 %v2234, 0.0
      %v2385 = vmax.f32 %v2239, 0.0
      %v2386 = vmax.f32 %v2244, 0.0
      %v2387 = vmax.f32 %v2249, 0.0
      %v2388 = vmax.f32 %v2254, 0.0
      %v2389 = vmax.f32 %v2259, 0.0
      %v2390 = vmax.f32 %v2264, 0.0
      %v2391 = vmax.f32 %v2269, 0.0
      %v2392 = vmax.f32 %v2274, 0.0
      %v2393 = vmax.f32 %v2279, 0.0
      %v2394 = vmax.f32 %v2284, 0.0
      %v2395 = vmax.f32 %v2289, 0.0
      %v2396 = vmax.f32 %v2294, 0.0
      %v2397 = vmax.f32 %v2299, 0.0
      %v2398 = vmax.f32 %v2304, 0.0
      %v2399 = vmax.f32 %v2309, 0.0
      %v2400 = vmax.f32 %v2314, 0.0
      %v2401 = vmax.f32 %v2319, 0.0
      %v2402 = vmax.f32 %v2324, 0.0
      %v2403 = vmax.f32 %v2329, 0.0
      %v2404 = vmax.f32 %v2334, 0.0
      %v2405 = vmax.f32 %v2339, 0.0
      %v2406 = vmax.f32 %v2344, 0.0
      %v2407 = vmax.f32 %v2349, 0.0
      %v2408 = vmax.f32 %v2354, 0.0
      %v2409 = vmax.f32 %v2359, 0.0
      %v2410 = vmax.f32 %v2364, 0.0
      %v2411 = vmax.f32 %v2369, 0.0
      %v2412 = vmax.f32 %v2374, 0.0
      %v2413 = vmax.f32 %v2379, 0.0
      %v2414 = vld [vmem:[%s5] sm:$0x1f]
      %v2415 = vld [vmem:[%s6 + $0x4] ss:$0 sm:$0xff]
      %vm2416 = vcmask 39936
      %v2418 = vsel %vm2416, %v2382, 0
      %v2421 = vsel %vm2416, %v2383, 0
      %v2424 = vsel %vm2416, %v2384, 0
      %v2427 = vsel %vm2416, %v2385, 0
      %v2430 = vsel %vm2416, %v2386, 0
      %v2433 = vsel %vm2416, %v2387, 0
      %v2436 = vsel %vm2416, %v2388, 0
      %v2439 = vsel %vm2416, %v2389, 0
      %v2442 = vsel %vm2416, %v2390, 0
      %v2445 = vsel %vm2416, %v2391, 0
      %v2448 = vsel %vm2416, %v2392, 0
      %v2451 = vsel %vm2416, %v2393, 0
      %v2454 = vsel %vm2416, %v2394, 0
      %v2457 = vsel %vm2416, %v2395, 0
      %v2460 = vsel %vm2416, %v2396, 0
      %v2463 = vsel %vm2416, %v2397, 0
      %v2466 = vsel %vm2416, %v2398, 0
      %v2469 = vsel %vm2416, %v2399, 0
      %v2472 = vsel %vm2416, %v2400, 0
      %v2475 = vsel %vm2416, %v2401, 0
      %v2478 = vsel %vm2416, %v2402, 0
      %v2481 = vsel %vm2416, %v2403, 0
      %v2484 = vsel %vm2416, %v2404, 0
      %v2487 = vsel %vm2416, %v2405, 0
      %v2490 = vsel %vm2416, %v2406, 0
      %v2493 = vsel %vm2416, %v2407, 0
      %v2496 = vsel %vm2416, %v2408, 0
      %v2499 = vsel %vm2416, %v2409, 0
      %v2502 = vsel %vm2416, %v2410, 0
      %v2505 = vsel %vm2416, %v2411, 0
      %v2508 = vsel %vm2416, %v2412, 0
      %v2511 = vsel %vm2416, %v2413, 0
      %vm2513 = vcmask 1044480
      %v2515 = vsel %vm2513, %v2414, 0
      %2517 = vmatprep.subr.mxu0 0.0
      %2518 = vmatpush1.msra.mxu0 %v2515
      %2519 = vmatprep.subr.mxu0 0.0
      %2520 = vmatpush1.msra.mxu0 0.0
      %2521 = vmatprep.subr.mxu0 0.0
      %2522 = vmatpush1.msra.mxu0 0.0
      %2523 = vmatprep.subr.mxu0 0.0
      %2524 = vmatpush1.msra.mxu0 0.0
      %2525 = vmatprep.subr.mxu0 0.0
      %2526 = vmatpush1.msra.mxu0 0.0
      %2527 = vmatprep.subr.mxu0 0.0
      %2528 = vmatpush1.msra.mxu0 0.0
      %2529 = vmatprep.subr.mxu0 0.0
      %2530 = vmatpush1.msra.mxu0 0.0
      %2531 = vmatprep.subr.mxu0 0.0
      %2532 = vmatpush1.msra.mxu0 0.0
      %2533 = vmatprep.subr.mxu0 0.0
      %2534 = vmatpush1.msra.mxu0 0.0
      %2535 = vmatprep.subr.mxu0 0.0
      %2536 = vmatpush1.msra.mxu0 0.0
      %2537 = vmatprep.subr.mxu0 0.0
      %2538 = vmatpush1.msra.mxu0 0.0
      %2539 = vmatprep.subr.mxu0 0.0
      %2540 = vmatpush1.msra.mxu0 0.0
      %2541 = vmatprep.subr.mxu0 0.0
      %2542 = vmatpush1.msra.mxu0 0.0
      %2543 = vmatprep.subr.mxu0 0.0
      %2544 = vmatpush1.msra.mxu0 0.0
      %2545 = vmatprep.subr.mxu0 0.0
      %2546 = vmatpush1.msra.mxu0 0.0
      %2547 = vmatprep.subr.mxu0 0.0
      %2548 = vmatpush1.msra.mxu0 0.0
      %2549 = vmatprep.subr.mxu0 0.0
      %2550 = vmatpush1.msra.mxu0 0.0
      %2551 = vmatprep.subr.mxu0 0.0
      %2552 = vmatpush1.msra.mxu0 0.0
      %2553 = vmatprep.subr.mxu0 0.0
      %2554 = vmatpush1.msra.mxu0 0.0
      %2555 = vmatprep.subr.mxu0 0.0
      %2556 = vmatpush1.msra.mxu0 0.0
      %2557 = vmatprep.subr.mxu0 0.0
      %2558 = vmatpush1.msra.mxu0 0.0
      %2559 = vmatprep.subr.mxu0 0.0
      %2560 = vmatpush1.msra.mxu0 0.0
      %2561 = vmatprep.subr.mxu0 0.0
      %2562 = vmatpush1.msra.mxu0 0.0
      %2563 = vmatprep.subr.mxu0 0.0
      %2564 = vmatpush1.msra.mxu0 0.0
      %2565 = vmatprep.subr.mxu0 0.0
      %2566 = vmatpush1.msra.mxu0 0.0
      %2567 = vmatprep.subr.mxu0 0.0
      %2568 = vmatpush1.msra.mxu0 0.0
      %2569 = vmatprep.subr.mxu0 0.0
      %2570 = vmatpush1.msra.mxu0 0.0
      %2571 = vmatprep.subr.mxu0 0.0
      %2572 = vmatpush1.msra.mxu0 0.0
      %2573 = vmatprep.subr.mxu0 0.0
      %2574 = vmatpush1.msra.mxu0 0.0
      %2575 = vmatprep.subr.mxu0 0.0
      %2576 = vmatpush1.msra.mxu0 0.0
      %2577 = vmatprep.subr.mxu0 0.0
      %2578 = vmatpush1.msra.mxu0 0.0
      %2579 = vmatprep.subr.mxu0 0.0
      %2580 = vmatpush1.msra.mxu0 0.0
      %2581 = vmatprep.mubr.f32.mxu0 0.0
      %2582 = vmatmul.mubr.f32.gmra.mrb[0].mxu0 %v2418
      %v2583 = vpop.f32.mrb[0].mxu0
      %v2584 = vadd.f32 %v2415, %v2583
      %v2585 = vpop.f32.mrb[0].mxu0
      %2586 = vmatprep.mubr.f32.mxu0 0.0
      %2587 = vmatmul.mubr.f32.gmra.mrb[0].mxu0 %v2421
      %v2588 = vpop.f32.mrb[0].mxu0
      %v2589 = vadd.f32 %v2415, %v2588
      %v2590 = vpop.f32.mrb[0].mxu0
      %2591 = vmatprep.mubr.f32.mxu0 0.0
      %2592 = vmatmul.mubr.f32.gmra.mrb[0].mxu0 %v2424
      %v2593 = vpop.f32.mrb[0].mxu0
      %v2594 = vadd.f32 %v2415, %v2593
      %v2595 = vpop.f32.mrb[0].mxu0
      %2596 = vmatprep.mubr.f32.mxu0 0.0
      %2597 = vmatmul.mubr.f32.gmra.mrb[0].mxu0 %v2427
      %v2598 = vpop.f32.mrb[0].mxu0
      %v2599 = vadd.f32 %v2415, %v2598
      %v2600 = vpop.f32.mrb[0].mxu0
      %2601 = vmatprep.mubr.f32.mxu0 0.0
      %2602 = vmatmul.mubr.f32.gmra.mrb[0].mxu0 %v2430
      %v2603 = vpop.f32.mrb[0].mxu0
      %v2604 = vadd.f32 %v2415, %v2603
      %v2605 = vpop.f32.mrb[0].mxu0
      %2606 = vmatprep.mubr.f32.mxu0 0.0
      %2607 = vmatmul.mubr.f32.gmra.mrb[0].mxu0 %v2433
      %v2608 = vpop.f32.mrb[0].mxu0
      %v2609 = vadd.f32 %v2415, %v2608
      %v2610 = vpop.f32.mrb[0].mxu0
      %2611 = vmatprep.mubr.f32.mxu0 0.0
      %2612 = vmatmul.mubr.f32.gmra.mrb[0].mxu0 %v2436
      %v2613 = vpop.f32.mrb[0].mxu0
      %v2614 = vadd.f32 %v2415, %v2613
      %v2615 = vpop.f32.mrb[0].mxu0
      %2616 = vmatprep.mubr.f32.mxu0 0.0
      %2617 = vmatmul.mubr.f32.gmra.mrb[0].mxu0 %v2439
      %v2618 = vpop.f32.mrb[0].mxu0
      %v2619 = vadd.f32 %v2415, %v2618
      %v2620 = vpop.f32.mrb[0].mxu0
      %2621 = vmatprep.mubr.f32.mxu0 0.0
      %2622 = vmatmul.mubr.f32.gmra.mrb[0].mxu0 %v2442
      %v2623 = vpop.f32.mrb[0].mxu0
      %v2624 = vadd.f32 %v2415, %v2623
      %v2625 = vpop.f32.mrb[0].mxu0
      %2626 = vmatprep.mubr.f32.mxu0 0.0
      %2627 = vmatmul.mubr.f32.gmra.mrb[0].mxu0 %v2445
      %v2628 = vpop.f32.mrb[0].mxu0
      %v2629 = vadd.f32 %v2415, %v2628
      %v2630 = vpop.f32.mrb[0].mxu0
      %2631 = vmatprep.mubr.f32.mxu0 0.0
      %2632 = vmatmul.mubr.f32.gmra.mrb[0].mxu0 %v2448
      %v2633 = vpop.f32.mrb[0].mxu0
      %v2634 = vadd.f32 %v2415, %v2633
      %v2635 = vpop.f32.mrb[0].mxu0
      %2636 = vmatprep.mubr.f32.mxu0 0.0
      %2637 = vmatmul.mubr.f32.gmra.mrb[0].mxu0 %v2451
      %v2638 = vpop.f32.mrb[0].mxu0
      %v2639 = vadd.f32 %v2415, %v2638
      %v2640 = vpop.f32.mrb[0].mxu0
      %2641 = vmatprep.mubr.f32.mxu0 0.0
      %2642 = vmatmul.mubr.f32.gmra.mrb[0].mxu0 %v2454
      %v2643 = vpop.f32.mrb[0].mxu0
      %v2644 = vadd.f32 %v2415, %v2643
      %v2645 = vpop.f32.mrb[0].mxu0
      %2646 = vmatprep.mubr.f32.mxu0 0.0
      %2647 = vmatmul.mubr.f32.gmra.mrb[0].mxu0 %v2457
      %v2648 = vpop.f32.mrb[0].mxu0
      %v2649 = vadd.f32 %v2415, %v2648
      %v2650 = vpop.f32.mrb[0].mxu0
      %2651 = vmatprep.mubr.f32.mxu0 0.0
      %2652 = vmatmul.mubr.f32.gmra.mrb[0].mxu0 %v2460
      %v2653 = vpop.f32.mrb[0].mxu0
      %v2654 = vadd.f32 %v2415, %v2653
      %v2655 = vpop.f32.mrb[0].mxu0
      %2656 = vmatprep.mubr.f32.mxu0 0.0
      %2657 = vmatmul.mubr.f32.gmra.mrb[0].mxu0 %v2463
      %v2658 = vpop.f32.mrb[0].mxu0
      %v2659 = vadd.f32 %v2415, %v2658
      %v2660 = vpop.f32.mrb[0].mxu0
      %2661 = vmatprep.mubr.f32.mxu0 0.0
      %2662 = vmatmul.mubr.f32.gmra.mrb[0].mxu0 %v2466
      %v2663 = vpop.f32.mrb[0].mxu0
      %v2664 = vadd.f32 %v2415, %v2663
      %v2665 = vpop.f32.mrb[0].mxu0
      %2666 = vmatprep.mubr.f32.mxu0 0.0
      %2667 = vmatmul.mubr.f32.gmra.mrb[0].mxu0 %v2469
      %v2668 = vpop.f32.mrb[0].mxu0
      %v2669 = vadd.f32 %v2415, %v2668
      %v2670 = vpop.f32.mrb[0].mxu0
      %2671 = vmatprep.mubr.f32.mxu0 0.0
      %2672 = vmatmul.mubr.f32.gmra.mrb[0].mxu0 %v2472
      %v2673 = vpop.f32.mrb[0].mxu0
      %v2674 = vadd.f32 %v2415, %v2673
      %v2675 = vpop.f32.mrb[0].mxu0
      %2676 = vmatprep.mubr.f32.mxu0 0.0
      %2677 = vmatmul.mubr.f32.gmra.mrb[0].mxu0 %v2475
      %v2678 = vpop.f32.mrb[0].mxu0
      %v2679 = vadd.f32 %v2415, %v2678
      %v2680 = vpop.f32.mrb[0].mxu0
      %2681 = vmatprep.mubr.f32.mxu0 0.0
      %2682 = vmatmul.mubr.f32.gmra.mrb[0].mxu0 %v2478
      %v2683 = vpop.f32.mrb[0].mxu0
      %v2684 = vadd.f32 %v2415, %v2683
      %v2685 = vpop.f32.mrb[0].mxu0
      %2686 = vmatprep.mubr.f32.mxu0 0.0
      %2687 = vmatmul.mubr.f32.gmra.mrb[0].mxu0 %v2481
      %v2688 = vpop.f32.mrb[0].mxu0
      %v2689 = vadd.f32 %v2415, %v2688
      %v2690 = vpop.f32.mrb[0].mxu0
      %2691 = vmatprep.mubr.f32.mxu0 0.0
      %2692 = vmatmul.mubr.f32.gmra.mrb[0].mxu0 %v2484
      %v2693 = vpop.f32.mrb[0].mxu0
      %v2694 = vadd.f32 %v2415, %v2693
      %v2695 = vpop.f32.mrb[0].mxu0
      %2696 = vmatprep.mubr.f32.mxu0 0.0
      %2697 = vmatmul.mubr.f32.gmra.mrb[0].mxu0 %v2487
      %v2698 = vpop.f32.mrb[0].mxu0
      %v2699 = vadd.f32 %v2415, %v2698
      %v2700 = vpop.f32.mrb[0].mxu0
      %2701 = vmatprep.mubr.f32.mxu0 0.0
      %2702 = vmatmul.mubr.f32.gmra.mrb[0].mxu0 %v2490
      %v2703 = vpop.f32.mrb[0].mxu0
      %v2704 = vadd.f32 %v2415, %v2703
      %v2705 = vpop.f32.mrb[0].mxu0
      %2706 = vmatprep.mubr.f32.mxu0 0.0
      %2707 = vmatmul.mubr.f32.gmra.mrb[0].mxu0 %v2493
      %v2708 = vpop.f32.mrb[0].mxu0
      %v2709 = vadd.f32 %v2415, %v2708
      %v2710 = vpop.f32.mrb[0].mxu0
      %2711 = vmatprep.mubr.f32.mxu0 0.0
      %2712 = vmatmul.mubr.f32.gmra.mrb[0].mxu0 %v2496
      %v2713 = vpop.f32.mrb[0].mxu0
      %v2714 = vadd.f32 %v2415, %v2713
      %v2715 = vpop.f32.mrb[0].mxu0
      %2716 = vmatprep.mubr.f32.mxu0 0.0
      %2717 = vmatmul.mubr.f32.gmra.mrb[0].mxu0 %v2499
      %v2718 = vpop.f32.mrb[0].mxu0
      %v2719 = vadd.f32 %v2415, %v2718
      %v2720 = vpop.f32.mrb[0].mxu0
      %2721 = vmatprep.mubr.f32.mxu0 0.0
      %2722 = vmatmul.mubr.f32.gmra.mrb[0].mxu0 %v2502
      %v2723 = vpop.f32.mrb[0].mxu0
      %v2724 = vadd.f32 %v2415, %v2723
      %v2725 = vpop.f32.mrb[0].mxu0
      %2726 = vmatprep.mubr.f32.mxu0 0.0
      %2727 = vmatmul.mubr.f32.gmra.mrb[0].mxu0 %v2505
      %v2728 = vpop.f32.mrb[0].mxu0
      %v2729 = vadd.f32 %v2415, %v2728
      %v2730 = vpop.f32.mrb[0].mxu0
      %2731 = vmatprep.mubr.f32.mxu0 0.0
      %2732 = vmatmul.mubr.f32.gmra.mrb[0].mxu0 %v2508
      %v2733 = vpop.f32.mrb[0].mxu0
      %v2734 = vadd.f32 %v2415, %v2733
      %v2735 = vpop.f32.mrb[0].mxu0
      %2736 = vmatprep.mubr.f32.mxu0 0.0
      %2737 = vmatmul.mubr.f32.gmra.mrb[0].mxu0 %v2511
      %v2738 = vpop.f32.mrb[0].mxu0
      %v2739 = vadd.f32 %v2415, %v2738
      %v2740 = vpop.f32.mrb[0].mxu0
      %2741 = vdwg.mxu0
      %vm2742 = vcmask 15360
      %v2743 = vsel %vm2742, %v2584, -inf
      %2744 = vmax.xlane.f32.xlu0 %v2743
      %v2745 = vpop.xlane.xlu0 %2744
      %v2746 = vsel %vm2742, %v2589, -inf
      %2747 = vmax.xlane.f32.xlu0 %v2746
      %v2748 = vpop.xlane.xlu0 %2747
      %v2749 = vsel %vm2742, %v2594, -inf
      %2750 = vmax.xlane.f32.xlu0 %v2749
      %v2751 = vpop.xlane.xlu0 %2750
      %v2752 = vsel %vm2742, %v2599, -inf
      %2753 = vmax.xlane.f32.xlu0 %v2752
      %v2754 = vpop.xlane.xlu0 %2753
      %v2755 = vsel %vm2742, %v2604, -inf
      %2756 = vmax.xlane.f32.xlu0 %v2755
      %v2757 = vpop.xlane.xlu0 %2756
      %v2758 = vsel %vm2742, %v2609, -inf
      %2759 = vmax.xlane.f32.xlu0 %v2758
      %v2760 = vpop.xlane.xlu0 %2759
      %v2761 = vsel %vm2742, %v2614, -inf
      %2762 = vmax.xlane.f32.xlu0 %v2761
      %v2763 = vpop.xlane.xlu0 %2762
      %v2764 = vsel %vm2742, %v2619, -inf
      %2765 = vmax.xlane.f32.xlu0 %v2764
      %v2766 = vpop.xlane.xlu0 %2765
      %v2767 = vsel %vm2742, %v2624, -inf
      %2768 = vmax.xlane.f32.xlu0 %v2767
      %v2769 = vpop.xlane.xlu0 %2768
      %v2770 = vsel %vm2742, %v2629, -inf
      %2771 = vmax.xlane.f32.xlu0 %v2770
      %v2772 = vpop.xlane.xlu0 %2771
      %v2773 = vsel %vm2742, %v2634, -inf
      %2774 = vmax.xlane.f32.xlu0 %v2773
      %v2775 = vpop.xlane.xlu0 %2774
      %v2776 = vsel %vm2742, %v2639, -inf
      %2777 = vmax.xlane.f32.xlu0 %v2776
      %v2778 = vpop.xlane.xlu0 %2777
      %v2779 = vsel %vm2742, %v2644, -inf
      %2780 = vmax.xlane.f32.xlu0 %v2779
      %v2781 = vpop.xlane.xlu0 %2780
      %v2782 = vsel %vm2742, %v2649, -inf
      %2783 = vmax.xlane.f32.xlu0 %v2782
      %v2784 = vpop.xlane.xlu0 %2783
      %v2785 = vsel %vm2742, %v2654, -inf
      %2786 = vmax.xlane.f32.xlu0 %v2785
      %v2787 = vpop.xlane.xlu0 %2786
      %v2788 = vsel %vm2742, %v2659, -inf
      %2789 = vmax.xlane.f32.xlu0 %v2788
      %v2790 = vpop.xlane.xlu0 %2789
      %v2791 = vsel %vm2742, %v2664, -inf
      %2792 = vmax.xlane.f32.xlu0 %v2791
      %v2793 = vpop.xlane.xlu0 %2792
      %v2794 = vsel %vm2742, %v2669, -inf
      %2795 = vmax.xlane.f32.xlu0 %v2794
      %v2796 = vpop.xlane.xlu0 %2795
      %v2797 = vsel %vm2742, %v2674, -inf
      %2798 = vmax.xlane.f32.xlu0 %v2797
      %v2799 = vpop.xlane.xlu0 %2798
      %v2800 = vsel %vm2742, %v2679, -inf
      %2801 = vmax.xlane.f32.xlu0 %v2800
      %v2802 = vpop.xlane.xlu0 %2801
      %v2803 = vsel %vm2742, %v2684, -inf
      %2804 = vmax.xlane.f32.xlu0 %v2803
      %v2805 = vpop.xlane.xlu0 %2804
      %v2806 = vsel %vm2742, %v2689, -inf
      %2807 = vmax.xlane.f32.xlu0 %v2806
      %v2808 = vpop.xlane.xlu0 %2807
      %v2809 = vsel %vm2742, %v2694, -inf
      %2810 = vmax.xlane.f32.xlu0 %v2809
      %v2811 = vpop.xlane.xlu0 %2810
      %v2812 = vsel %vm2742, %v2699, -inf
      %2813 = vmax.xlane.f32.xlu0 %v2812
      %v2814 = vpop.xlane.xlu0 %2813
      %v2815 = vsel %vm2742, %v2704, -inf
      %2816 = vmax.xlane.f32.xlu0 %v2815
      %v2817 = vpop.xlane.xlu0 %2816
      %v2818 = vsel %vm2742, %v2709, -inf
      %2819 = vmax.xlane.f32.xlu0 %v2818
      %v2820 = vpop.xlane.xlu0 %2819
      %v2821 = vsel %vm2742, %v2714, -inf
      %2822 = vmax.xlane.f32.xlu0 %v2821
      %v2823 = vpop.xlane.xlu0 %2822
      %v2824 = vsel %vm2742, %v2719, -inf
      %2825 = vmax.xlane.f32.xlu0 %v2824
      %v2826 = vpop.xlane.xlu0 %2825
      %v2827 = vsel %vm2742, %v2724, -inf
      %2828 = vmax.xlane.f32.xlu0 %v2827
      %v2829 = vpop.xlane.xlu0 %2828
      %v2830 = vsel %vm2742, %v2729, -inf
      %2831 = vmax.xlane.f32.xlu0 %v2830
      %v2832 = vpop.xlane.xlu0 %2831
      %v2833 = vsel %vm2742, %v2734, -inf
      %2834 = vmax.xlane.f32.xlu0 %v2833
      %v2835 = vpop.xlane.xlu0 %2834
      %v2836 = vsel %vm2742, %v2739, -inf
      %2837 = vmax.xlane.f32.xlu0 %v2836
      %v2838 = vpop.xlane.xlu0 %2837
      %v2839 = vsub.f32 %v2584, %v2745
      %v2840 = vsub.f32 %v2589, %v2748
      %v2841 = vsub.f32 %v2594, %v2751
      %v2842 = vsub.f32 %v2599, %v2754
      %v2843 = vsub.f32 %v2604, %v2757
      %v2844 = vsub.f32 %v2609, %v2760
      %v2845 = vsub.f32 %v2614, %v2763
      %v2846 = vsub.f32 %v2619, %v2766
      %v2847 = vsub.f32 %v2624, %v2769
      %v2848 = vsub.f32 %v2629, %v2772
      %v2849 = vsub.f32 %v2634, %v2775
      %v2850 = vsub.f32 %v2639, %v2778
      %v2851 = vsub.f32 %v2644, %v2781
      %v2852 = vsub.f32 %v2649, %v2784
      %v2853 = vsub.f32 %v2654, %v2787
      %v2854 = vsub.f32 %v2659, %v2790
      %v2855 = vsub.f32 %v2664, %v2793
      %v2856 = vsub.f32 %v2669, %v2796
      %v2857 = vsub.f32 %v2674, %v2799
      %v2858 = vsub.f32 %v2679, %v2802
      %v2859 = vsub.f32 %v2684, %v2805
      %v2860 = vsub.f32 %v2689, %v2808
      %v2861 = vsub.f32 %v2694, %v2811
      %v2862 = vsub.f32 %v2699, %v2814
      %v2863 = vsub.f32 %v2704, %v2817
      %v2864 = vsub.f32 %v2709, %v2820
      %v2865 = vsub.f32 %v2714, %v2823
      %v2866 = vsub.f32 %v2719, %v2826
      %v2867 = vsub.f32 %v2724, %v2829
      %v2868 = vsub.f32 %v2729, %v2832
      %v2869 = vsub.f32 %v2734, %v2835
      %v2870 = vsub.f32 %v2739, %v2838
      %v2871 = vmul.f32 %v2839, 1.442695
      %v2872 = vpow.pop %v2871
      %v2873 = vmul.f32 %v2840, 1.442695
      %v2874 = vpow.pop %v2873
      %v2875 = vmul.f32 %v2841, 1.442695
      %v2876 = vpow.pop %v2875
      %v2877 = vmul.f32 %v2842, 1.442695
      %v2878 = vpow.pop %v2877
      %v2879 = vmul.f32 %v2843, 1.442695
      %v2880 = vpow.pop %v2879
      %v2881 = vmul.f32 %v2844, 1.442695
      %v2882 = vpow.pop %v2881
      %v2883 = vmul.f32 %v2845, 1.442695
      %v2884 = vpow.pop %v2883
      %v2885 = vmul.f32 %v2846, 1.442695
      %v2886 = vpow.pop %v2885
      %v2887 = vmul.f32 %v2847, 1.442695
      %v2888 = vpow.pop %v2887
      %v2889 = vmul.f32 %v2848, 1.442695
      %v2890 = vpow.pop %v2889
      %v2891 = vmul.f32 %v2849, 1.442695
      %v2892 = vpow.pop %v2891
      %v2893 = vmul.f32 %v2850, 1.442695
      %v2894 = vpow.pop %v2893
      %v2895 = vmul.f32 %v2851, 1.442695
      %v2896 = vpow.pop %v2895
      %v2897 = vmul.f32 %v2852, 1.442695
      %v2898 = vpow.pop %v2897
      %v2899 = vmul.f32 %v2853, 1.442695
      %v2900 = vpow.pop %v2899
      %v2901 = vmul.f32 %v2854, 1.442695
      %v2902 = vpow.pop %v2901
      %v2903 = vmul.f32 %v2855, 1.442695
      %v2904 = vpow.pop %v2903
      %v2905 = vmul.f32 %v2856, 1.442695
      %v2906 = vpow.pop %v2905
      %v2907 = vmul.f32 %v2857, 1.442695
      %v2908 = vpow.pop %v2907
      %v2909 = vmul.f32 %v2858, 1.442695
      %v2910 = vpow.pop %v2909
      %v2911 = vmul.f32 %v2859, 1.442695
      %v2912 = vpow.pop %v2911
      %v2913 = vmul.f32 %v2860, 1.442695
      %v2914 = vpow.pop %v2913
      %v2915 = vmul.f32 %v2861, 1.442695
      %v2916 = vpow.pop %v2915
      %v2917 = vmul.f32 %v2862, 1.442695
      %v2918 = vpow.pop %v2917
      %v2919 = vmul.f32 %v2863, 1.442695
      %v2920 = vpow.pop %v2919
      %v2921 = vmul.f32 %v2864, 1.442695
      %v2922 = vpow.pop %v2921
      %v2923 = vmul.f32 %v2865, 1.442695
      %v2924 = vpow.pop %v2923
      %v2925 = vmul.f32 %v2866, 1.442695
      %v2926 = vpow.pop %v2925
      %v2927 = vmul.f32 %v2867, 1.442695
      %v2928 = vpow.pop %v2927
      %v2929 = vmul.f32 %v2868, 1.442695
      %v2930 = vpow.pop %v2929
      %v2931 = vmul.f32 %v2869, 1.442695
      %v2932 = vpow.pop %v2931
      %v2933 = vmul.f32 %v2870, 1.442695
      %v2934 = vpow.pop %v2933
      %v2935 = vsel %vm2742, %v2872, 0.0
      %2936 = vadd.xlane.f32.xlu0 %v2935
      %v2937 = vpop.xlane.xlu0 %2936
      %v2938 = vsel %vm2742, %v2874, 0.0
      %2939 = vadd.xlane.f32.xlu0 %v2938
      %v2940 = vpop.xlane.xlu0 %2939
      %v2941 = vsel %vm2742, %v2876, 0.0
      %2942 = vadd.xlane.f32.xlu0 %v2941
      %v2943 = vpop.xlane.xlu0 %2942
      %v2944 = vsel %vm2742, %v2878, 0.0
      %2945 = vadd.xlane.f32.xlu0 %v2944
      %v2946 = vpop.xlane.xlu0 %2945
      %v2947 = vsel %vm2742, %v2880, 0.0
      %2948 = vadd.xlane.f32.xlu0 %v2947
      %v2949 = vpop.xlane.xlu0 %2948
      %v2950 = vsel %vm2742, %v2882, 0.0
      %2951 = vadd.xlane.f32.xlu0 %v2950
      %v2952 = vpop.xlane.xlu0 %2951
      %v2953 = vsel %vm2742, %v2884, 0.0
      %2954 = vadd.xlane.f32.xlu0 %v2953
      %v2955 = vpop.xlane.xlu0 %2954
      %v2956 = vsel %vm2742, %v2886, 0.0
      %2957 = vadd.xlane.f32.xlu0 %v2956
      %v2958 = vpop.xlane.xlu0 %2957
      %v2959 = vsel %vm2742, %v2888, 0.0
      %2960 = vadd.xlane.f32.xlu0 %v2959
      %v2961 = vpop.xlane.xlu0 %2960
      %v2962 = vsel %vm2742, %v2890, 0.0
      %2963 = vadd.xlane.f32.xlu0 %v2962
      %v2964 = vpop.xlane.xlu0 %2963
      %v2965 = vsel %vm2742, %v2892, 0.0
      %2966 = vadd.xlane.f32.xlu0 %v2965
      %v2967 = vpop.xlane.xlu0 %2966
      %v2968 = vsel %vm2742, %v2894, 0.0
      %2969 = vadd.xlane.f32.xlu0 %v2968
      %v2970 = vpop.xlane.xlu0 %2969
      %v2971 = vsel %vm2742, %v2896, 0.0
      %2972 = vadd.xlane.f32.xlu0 %v2971
      %v2973 = vpop.xlane.xlu0 %2972
      %v2974 = vsel %vm2742, %v2898, 0.0
      %2975 = vadd.xlane.f32.xlu0 %v2974
      %v2976 = vpop.xlane.xlu0 %2975
      %v2977 = vsel %vm2742, %v2900, 0.0
      %2978 = vadd.xlane.f32.xlu0 %v2977
      %v2979 = vpop.xlane.xlu0 %2978
      %v2980 = vsel %vm2742, %v2902, 0.0
      %2981 = vadd.xlane.f32.xlu0 %v2980
      %v2982 = vpop.xlane.xlu0 %2981
      %v2983 = vsel %vm2742, %v2904, 0.0
      %2984 = vadd.xlane.f32.xlu0 %v2983
      %v2985 = vpop.xlane.xlu0 %2984
      %v2986 = vsel %vm2742, %v2906, 0.0
      %2987 = vadd.xlane.f32.xlu0 %v2986
      %v2988 = vpop.xlane.xlu0 %2987
      %v2989 = vsel %vm2742, %v2908, 0.0
      %2990 = vadd.xlane.f32.xlu0 %v2989
      %v2991 = vpop.xlane.xlu0 %2990
      %v2992 = vsel %vm2742, %v2910, 0.0
      %2993 = vadd.xlane.f32.xlu0 %v2992
      %v2994 = vpop.xlane.xlu0 %2993
      %v2995 = vsel %vm2742, %v2912, 0.0
      %2996 = vadd.xlane.f32.xlu0 %v2995
      %v2997 = vpop.xlane.xlu0 %2996
      %v2998 = vsel %vm2742, %v2914, 0.0
      %2999 = vadd.xlane.f32.xlu0 %v2998
      %v3000 = vpop.xlane.xlu0 %2999
      %v3001 = vsel %vm2742, %v2916, 0.0
      %3002 = vadd.xlane.f32.xlu0 %v3001
      %v3003 = vpop.xlane.xlu0 %3002
      %v3004 = vsel %vm2742, %v2918, 0.0
      %3005 = vadd.xlane.f32.xlu0 %v3004
      %v3006 = vpop.xlane.xlu0 %3005
      %v3007 = vsel %vm2742, %v2920, 0.0
      %3008 = vadd.xlane.f32.xlu0 %v3007
      %v3009 = vpop.xlane.xlu0 %3008
      %v3010 = vsel %vm2742, %v2922, 0.0
      %3011 = vadd.xlane.f32.xlu0 %v3010
      %v3012 = vpop.xlane.xlu0 %3011
      %v3013 = vsel %vm2742, %v2924, 0.0
      %3014 = vadd.xlane.f32.xlu0 %v3013
      %v3015 = vpop.xlane.xlu0 %3014
      %v3016 = vsel %vm2742, %v2926, 0.0
      %3017 = vadd.xlane.f32.xlu0 %v3016
      %v3018 = vpop.xlane.xlu0 %3017
      %v3019 = vsel %vm2742, %v2928, 0.0
      %3020 = vadd.xlane.f32.xlu0 %v3019
      %v3021 = vpop.xlane.xlu0 %3020
      %v3022 = vsel %vm2742, %v2930, 0.0
      %3023 = vadd.xlane.f32.xlu0 %v3022
      %v3024 = vpop.xlane.xlu0 %3023
      %v3025 = vsel %vm2742, %v2932, 0.0
      %3026 = vadd.xlane.f32.xlu0 %v3025
      %v3027 = vpop.xlane.xlu0 %3026
      %v3028 = vsel %vm2742, %v2934, 0.0
      %3029 = vadd.xlane.f32.xlu0 %v3028
      %v3030 = vpop.xlane.xlu0 %3029
      %v3031 = vrcp.pop %v2937
      %v3032 = vrcp.pop %v2940
      %v3033 = vrcp.pop %v2943
      %v3034 = vrcp.pop %v2946
      %v3035 = vrcp.pop %v2949
      %v3036 = vrcp.pop %v2952
      %v3037 = vrcp.pop %v2955
      %v3038 = vrcp.pop %v2958
      %v3039 = vrcp.pop %v2961
      %v3040 = vrcp.pop %v2964
      %v3041 = vrcp.pop %v2967
      %v3042 = vrcp.pop %v2970
      %v3043 = vrcp.pop %v2973
      %v3044 = vrcp.pop %v2976
      %v3045 = vrcp.pop %v2979
      %v3046 = vrcp.pop %v2982
      %v3047 = vrcp.pop %v2985
      %v3048 = vrcp.pop %v2988
      %v3049 = vrcp.pop %v2991
      %v3050 = vrcp.pop %v2994
      %v3051 = vrcp.pop %v2997
      %v3052 = vrcp.pop %v3000
      %v3053 = vrcp.pop %v3003
      %v3054 = vrcp.pop %v3006
      %v3055 = vrcp.pop %v3009
      %v3056 = vrcp.pop %v3012
      %v3057 = vrcp.pop %v3015
      %v3058 = vrcp.pop %v3018
      %v3059 = vrcp.pop %v3021
      %v3060 = vrcp.pop %v3024
      %v3061 = vrcp.pop %v3027
      %v3062 = vrcp.pop %v3030
      %v3063 = vmul.f32 %v2872, %v3031
      %v3064 = vmul.f32 %v2874, %v3032
      %v3065 = vmul.f32 %v2876, %v3033
      %v3066 = vmul.f32 %v2878, %v3034
      %v3067 = vmul.f32 %v2880, %v3035
      %v3068 = vmul.f32 %v2882, %v3036
      %v3069 = vmul.f32 %v2884, %v3037
      %v3070 = vmul.f32 %v2886, %v3038
      %v3071 = vmul.f32 %v2888, %v3039
      %v3072 = vmul.f32 %v2890, %v3040
      %v3073 = vmul.f32 %v2892, %v3041
      %v3074 = vmul.f32 %v2894, %v3042
      %v3075 = vmul.f32 %v2896, %v3043
      %v3076 = vmul.f32 %v2898, %v3044
      %v3077 = vmul.f32 %v2900, %v3045
      %v3078 = vmul.f32 %v2902, %v3046
      %v3079 = vmul.f32 %v2904, %v3047
      %v3080 = vmul.f32 %v2906, %v3048
      %v3081 = vmul.f32 %v2908, %v3049
      %v3082 = vmul.f32 %v2910, %v3050
      %v3083 = vmul.f32 %v2912, %v3051
      %v3084 = vmul.f32 %v2914, %v3052
      %v3085 = vmul.f32 %v2916, %v3053
      %v3086 = vmul.f32 %v2918, %v3054
      %v3087 = vmul.f32 %v2920, %v3055
      %v3088 = vmul.f32 %v2922, %v3056
      %v3089 = vmul.f32 %v2924, %v3057
      %v3090 = vmul.f32 %v2926, %v3058
      %v3091 = vmul.f32 %v2928, %v3059
      %v3092 = vmul.f32 %v2930, %v3060
      %v3093 = vmul.f32 %v2932, %v3061
      %v3094 = vmul.f32 %v2934, %v3062
      %3095 = vst.msk [vmem:[%s280] sm:$0xff] %vm2742, %v3063
      %3096 = vst.msk [vmem:[%s280 + $0x8] sm:$0xff] %vm2742, %v3064
      %3097 = vst.msk [vmem:[%s280 + $0x10] sm:$0xff] %vm2742, %v3065
      %3098 = vst.msk [vmem:[%s280 + $0x18] sm:$0xff] %vm2742, %v3066
      %3099 = vst.msk [vmem:[%s280 + $0x20] sm:$0xff] %vm2742, %v3067
      %3100 = vst.msk [vmem:[%s280 + $0x28] sm:$0xff] %vm2742, %v3068
      %3101 = vst.msk [vmem:[%s280 + $0x30] sm:$0xff] %vm2742, %v3069
      %3102 = vst.msk [vmem:[%s280 + $0x38] sm:$0xff] %vm2742, %v3070
      %3103 = vst.msk [vmem:[%s280 + $0x40] sm:$0xff] %vm2742, %v3071
      %3104 = vst.msk [vmem:[%s280 + $0x48] sm:$0xff] %vm2742, %v3072
      %3105 = vst.msk [vmem:[%s280 + $0x50] sm:$0xff] %vm2742, %v3073
      %3106 = vst.msk [vmem:[%s280 + $0x58] sm:$0xff] %vm2742, %v3074
      %3107 = vst.msk [vmem:[%s280 + $0x60] sm:$0xff] %vm2742, %v3075
      %3108 = vst.msk [vmem:[%s280 + $0x68] sm:$0xff] %vm2742, %v3076
      %3109 = vst.msk [vmem:[%s280 + $0x70] sm:$0xff] %vm2742, %v3077
      %3110 = vst.msk [vmem:[%s280 + $0x78] sm:$0xff] %vm2742, %v3078
      %3111 = vst.msk [vmem:[%s280 + $0x80] sm:$0xff] %vm2742, %v3079
      %3112 = vst.msk [vmem:[%s280 + $0x88] sm:$0xff] %vm2742, %v3080
      %3113 = vst.msk [vmem:[%s280 + $0x90] sm:$0xff] %vm2742, %v3081
      %3114 = vst.msk [vmem:[%s280 + $0x98] sm:$0xff] %vm2742, %v3082
      %3115 = vst.msk [vmem:[%s280 + $0xa0] sm:$0xff] %vm2742, %v3083
      %3116 = vst.msk [vmem:[%s280 + $0xa8] sm:$0xff] %vm2742, %v3084
      %3117 = vst.msk [vmem:[%s280 + $0xb0] sm:$0xff] %vm2742, %v3085
      %3118 = vst.msk [vmem:[%s280 + $0xb8] sm:$0xff] %vm2742, %v3086
      %3119 = vst.msk [vmem:[%s280 + $0xc0] sm:$0xff] %vm2742, %v3087
      %3120 = vst.msk [vmem:[%s280 + $0xc8] sm:$0xff] %vm2742, %v3088
      %3121 = vst.msk [vmem:[%s280 + $0xd0] sm:$0xff] %vm2742, %v3089
      %3122 = vst.msk [vmem:[%s280 + $0xd8] sm:$0xff] %vm2742, %v3090
      %3123 = vst.msk [vmem:[%s280 + $0xe0] sm:$0xff] %vm2742, %v3091
      %3124 = vst.msk [vmem:[%s280 + $0xe8] sm:$0xff] %vm2742, %v3092
      %3125 = vst.msk [vmem:[%s280 + $0xf0] sm:$0xff] %vm2742, %v3093
      %3126 = vst.msk [vmem:[%s280 + $0xf8] sm:$0xff] %vm2742, %v3094
      %s3127 = smul.u32 32, %s18
      %p3128 = scmp.lt.s32.totalorder %s3127, 63
      %s3129 = scalar_select %p3128, %s3127, 63
      %s3130 = smul.addr %s3129, 8
      %s3131 = scalar_lea.vmem %s7, %s3130
      // Predicated region
      $region49: #{tpu_custom_call.1} parent=47 // pred_check
        %p3132 = pneg %p188
      $region50: #{tpu_custom_call.1} parent=47 // pred_check_branch
        %3134 = sbr.rel (%p3132) target = $region52
      $region51: #{tpu_custom_call.1} parent=47 // pred_region
        %s3135 = smul.u32 32, %s18
      $region52: #{tpu_custom_call.1} parent=47 // pred_fallthru
        _
    $region48: #{tpu_custom_call.1} parent=5 // pred_fallthru
      _
    %p3136 = scmp.le.s32.totalorder 2, %s13
    // Predicated region
    $region53: #{tpu_custom_call.1} parent=5 // pred_check
      %p3137 = pneg %p3136
    $region54: #{tpu_custom_call.1} parent=5 // pred_check_branch
      %3139 = sbr.rel (%p3137) target = $region56
    $region55: #{tpu_custom_call.1} parent=5 // pred_region
      %s3140 = ssub.s32 %s13, 2
      // Predicated region
      $region57: #{tpu_custom_call.1} parent=55 // pred_check
        %p3141 = pneg %p194
      $region58: #{tpu_custom_call.1} parent=55 // pred_check_branch
        %3143 = sbr.rel (%p3141) target = $region60
      $region59: #{tpu_custom_call.1} parent=55 // pred_region
        %s3144 = smul.u32 32, %s19
        %p3145 = scmp.lt.s32.totalorder %s3144, 63
        %s3146 = scalar_select %p3145, %s3144, 63
        %s3147 = smul.addr %s3146, 8
        %s3148 = scalar_lea.vmem %s7, %s3147
      $region60: #{tpu_custom_call.1} parent=55 // pred_fallthru
        _
    $region56: #{tpu_custom_call.1} parent=5 // pred_fallthru
      _
  $region6: #{tpu_custom_call.1} parent=0 // loop_footer
    %s17 = sadd.s32 1, %s13
  $region7: #{tpu_custom_call.1} parent=0 // loop_footer_branch
    %12 = sbr.rel target = $region3
  $region8: #{tpu_custom_call.1} parent=0 // loop_exit
    _

</llo_original>
